<compile_context>
chip_gen: v5e
topology: v5e:2x2
jax: 0.10.0
libtpu: 0.0.40
codegen_flags: <defaults>
</compile_context>

<pallas_src>
import functools

import jax
import jax.numpy as jnp
import numpy as np
from jax.experimental import pallas as pl
from jax.experimental.pallas import tpu as pltpu

_NEG_BIG = -1e30  # finite stand-in for -inf: exp(_NEG_BIG - m) == 0.0 exactly in f32


def _cca_kernel(gamma_ref, xr_ref, xc_ref, w_ref, b_ref, o_ref, *,
                bblk, H, W, C, Cq, mxu_dtype):
    """Criss-cross attention for one block of `bblk` images.

    gamma_ref: (1,)              SMEM scalar
    xr_ref:    (bblk*H*W, C)     channels-last pixel rows, (b, i, j)-major
    xc_ref:    (bblk*W*H, C)     channels-last pixel rows, (b, j, i)-major
    w_ref:     (C, 2*Cq + C)     fused [wq^T | wk^T | wv^T]
    b_ref:     (1, 2*Cq + C)     fused biases
    o_ref:     (bblk*H, W*C)     lane-dense output slab, (b, i)-major rows
    """
    xr = xr_ref[...]                                   # (bblk*H*W, C)
    xc = xc_ref[...]                                   # (bblk*W*H, C)
    w = w_ref[...]
    b = b_ref[...]

    mx = lambda t: t.astype(mxu_dtype)                 # no-op when mxu_dtype == f32

    # Fused 1x1-conv projections, once per spatial layout.  Projecting the
    # column-major view directly replaces the big in-kernel XLU relayouts of
    # v_c (and the tiny q_c/k_c ones) with a cheap duplicated MXU matmul.
    qkv_r = jnp.dot(mx(xr), mx(w), preferred_element_type=jnp.float32) + b
    qkv_c = jnp.dot(mx(xc), mx(w), preferred_element_type=jnp.float32) + b

    # "Row world": batch over (b, i) image rows, attention axis = W (width).
    q_r = qkv_r[:, :Cq].reshape(bblk * H, W, Cq)
    k_r = qkv_r[:, Cq:2 * Cq].reshape(bblk * H, W, Cq)
    v_r = qkv_r[:, 2 * Cq:].reshape(bblk * H, W, C)

    # "Column world": batch over (b, j) image columns, attention axis = H.
    q_c = qkv_c[:, :Cq].reshape(bblk * W, H, Cq)
    k_c = qkv_c[:, Cq:2 * Cq].reshape(bblk * W, H, Cq)
    v_c = qkv_c[:, 2 * Cq:].reshape(bblk * W, H, C)

    def energy(a, b_):
        # e[g, i, l] = sum_c a[g, i, c] * b_[g, l, c]
        if Cq <= 2:
            # Tiny contraction depth: a couple of VPU broadcast-FMAs.
            e = a[:, :, 0][:, :, None] * b_[:, :, 0][:, None, :]
            for c in range(1, Cq):
                e = e + a[:, :, c][:, :, None] * b_[:, :, c][:, None, :]
            return e
        # Deeper contraction: batch-leading MXU matmul (MXU is idle here).
        return jnp.einsum('gic,glc->gil', mx(a), mx(b_),
                          preferred_element_type=jnp.float32)

    e_w = energy(q_r, k_r)                             # (bblk*H, W, W)  [b,i | j, w]
    e_h = energy(q_c, k_c)                             # (bblk*W, H, H)  [b,j | i, h]

    # -inf (large finite negative) on the h == i diagonal of the height
    # energy, applied post-matmul in f32.
    ii = jax.lax.broadcasted_iota(jnp.int32, (H, H), 0)
    hh = jax.lax.broadcasted_iota(jnp.int32, (H, H), 1)
    e_h = jnp.where((ii == hh)[None, :, :], _NEG_BIG, e_h)

    # Joint softmax over the concatenated (H + W) axis without materializing
    # the concat.  Row<->column swaps only touch tiny (.., H/W) stat tensors.
    def col_to_row(t):   # (bblk*W, H) -> (bblk*H, W)
        return t.reshape(bblk, W, H).transpose(0, 2, 1).reshape(bblk * H, W)

    def row_to_col(t):   # (bblk*H, W) -> (bblk*W, H)
        return t.reshape(bblk, H, W).transpose(0, 2, 1).reshape(bblk * W, H)

    m = jnp.maximum(jnp.max(e_w, axis=-1), col_to_row(jnp.max(e_h, axis=-1)))   # (bblk*H, W)
    p_w = jnp.exp(e_w - m[:, :, None])
    p_h = jnp.exp(e_h - row_to_col(m)[:, :, None])
    denom = jnp.sum(p_w, axis=-1) + col_to_row(jnp.sum(p_h, axis=-1))           # (bblk*H, W)
    inv = pl.reciprocal(denom, approx=True)            # EUP slot
    inv = inv * (2.0 - denom * inv)                    # one Newton step -> ~f32 accuracy
    att_w = p_w * inv[:, :, None]                      # (bblk*H, W, W)
    att_h = p_h * row_to_col(inv)[:, :, None]          # (bblk*W, H, H)

    # Aggregations: batch-leading batched matmuls (contraction/output dims
    # trailing), so Mosaic emits clean dots without middle-batch relayouts.
    out_w = jnp.einsum('gjw,gwc->gjc', mx(att_w), mx(v_r),
                       preferred_element_type=jnp.float32)       # (bblk*H, W, C)
    out_h_c = jnp.einsum('gih,ghc->gic', mx(att_h), mx(v_c),
                         preferred_element_type=jnp.float32)     # (bblk*W, H, C)
    # Sole remaining large relayout: column-batched out_h back to row order.
    out_h = (out_h_c.reshape(bblk, W, H, C)
                    .transpose(0, 2, 1, 3)
                    .reshape(bblk * H, W, C))

    gamma = gamma_ref[0]
    out = gamma * (out_h + out_w) + xr.reshape(bblk * H, W, C)   # f32 epilogue

    # Lane-dense store: single reshape (last dim W*C), no per-column copies.
    o_ref[...] = out.reshape(bblk * H, W * C)


def criss_cross_attention(x, wq, bq, wk, bk, wv, bv, gamma, *,
                          batch_block=None, mxu_dtype=jnp.float32):
    """x: (B, C, H, W) NCHW -> (B, C, H, W) NCHW (same as the PyTorch module)."""
    B, C, H, W = x.shape
    Cq = wq.shape[0]

    # Batch tiling: prefer >=2 grid steps whenever possible (engages v7x
    # megacore sharding via the "parallel" axis and lets BlockSpec
    # double-buffering overlap input DMA / output writeback with compute),
    # while keeping each block as large as possible.
    if batch_block is None:
        batch_block = B // 2 if B >= 2 else 1
    batch_block = max(1, min(batch_block, B))
    while B % batch_block:
        batch_block -= 1
    nb = B // batch_block

    # Glue: NCHW -> channels-last pixel rows in both (b,i,j)- and (b,j,i)-major
    # order.  The column-major view rides in HBM/DMA so the kernel never has
    # to transpose the C-wide value tensor on the XLU.
    # TODO(synk): if the surrounding graph can carry NHWC, drop these
    # transposes and the final one (full-activation HBM round-trips).
    x_row = jnp.transpose(x, (0, 2, 3, 1)).reshape(B * H * W, C)
    x_col = jnp.transpose(x, (0, 3, 2, 1)).reshape(B * W * H, C)

    # Fuse the three 1x1-conv projections into one matmul operand.
    w_all = jnp.concatenate([wq.T, wk.T, wv.T], axis=1)          # (C, 2*Cq + C)
    b_all = jnp.concatenate([bq, bk, bv]).reshape(1, 2 * Cq + C)

    kernel = functools.partial(_cca_kernel, bblk=batch_block, H=H, W=W, C=C,
                               Cq=Cq, mxu_dtype=mxu_dtype)

    out2d = pl.pallas_call(
        kernel,
        out_shape=jax.ShapeDtypeStruct((B * H, W * C), jnp.float32),
        grid=(nb,),
        in_specs=[
            pl.BlockSpec(memory_space=pltpu.MemorySpace.SMEM),               # gamma (1,)
            pl.BlockSpec((batch_block * H * W, C), lambda b: (b, 0)),        # x rows (row-major)
            pl.BlockSpec((batch_block * W * H, C), lambda b: (b, 0)),        # x rows (col-major)
            pl.BlockSpec((C, 2 * Cq + C), lambda b: (0, 0)),                 # fused weights
            pl.BlockSpec((1, 2 * Cq + C), lambda b: (0, 0)),                 # fused biases
        ],
        out_specs=pl.BlockSpec((batch_block * H, W * C), lambda b: (b, 0)),
        compiler_params=pltpu.CompilerParams(
            dimension_semantics=("parallel",),        # independent batch blocks (2 TCs on v7x)
            vmem_limit_bytes=32 * 1024 * 1024,        # safe on all generations at these sizes
        ),
    )(gamma, x_row, x_col, w_all, b_all)

    # Glue: lane-dense (B*H, W*C) slab -> NCHW.
    return jnp.transpose(out2d.reshape(B, H, W, C), (0, 3, 1, 2))


def cca_reference(x, wq, bq, wk, bk, wv, bv, gamma):
    """Pure-JAX reference mirroring the PyTorch forward."""
    B, C, H, W = x.shape
    q = jnp.einsum('oc,bchw->bohw', wq, x) + bq[None, :, None, None]
    k = jnp.einsum('oc,bchw->bohw', wk, x) + bk[None, :, None, None]
    v = jnp.einsum('oc,bchw->bohw', wv, x) + bv[None, :, None, None]
    e_h = jnp.einsum('bcij,bchj->bijh', q, k)
    diag = jnp.eye(H, dtype=bool)                                # (i, h)
    e_h = jnp.where(diag[None, :, None, :], -jnp.inf, e_h)
    e_w = jnp.einsum('bcij,bciw->bijw', q, k)
    att = jax.nn.softmax(jnp.concatenate([e_h, e_w], axis=-1), axis=-1)
    att_h, att_w = att[..., :H], att[..., H:]
    out_h = jnp.einsum('bchj,bijh->bcij', v, att_h)
    out_w = jnp.einsum('bciw,bijw->bcij', v, att_w)
    return gamma[0] * (out_h + out_w) + x


if __name__ == "__main__":
    B, C, H, W = 2, 16, 8, 8       # in_dim = 16  ->  query/key channels = 16 // 8 = 2
    Cq = C // 8

    key = jax.random.PRNGKey(0)
    k_x, k_wq, k_bq, k_wk, k_bk, k_wv, k_bv = jax.random.split(key, 7)

    x = jax.random.normal(k_x, (B, C, H, W), jnp.float32)
    wq = jax.random.normal(k_wq, (Cq, C), jnp.float32) * 0.2
    bq = jax.random.normal(k_bq, (Cq,), jnp.float32) * 0.1
    wk = jax.random.normal(k_wk, (Cq, C), jnp.float32) * 0.2
    bk = jax.random.normal(k_bk, (Cq,), jnp.float32) * 0.1
    wv = jax.random.normal(k_wv, (C, C), jnp.float32) * 0.2
    bv = jax.random.normal(k_bv, (C,), jnp.float32) * 0.1
    # NOTE: the PyTorch module initializes gamma to 0 (output == x); we use a
    # nonzero value so the attention path is actually exercised and verified.
    gamma = jnp.array([0.5], dtype=jnp.float32)

    out = criss_cross_attention(x, wq, bq, wk, bk, wv, bv, gamma)
    out = jax.block_until_ready(out)

    ref = cca_reference(x, wq, bq, wk, bk, wv, bv, gamma)
    # Newton-refined reciprocal + f32 matmuls/softmax -> tight tolerance again.
    np.testing.assert_allclose(np.asarray(out), np.asarray(ref), rtol=1e-4, atol=1e-4)

    print("KERNEL_OK")
</pallas_src>

<mosaic_0001>
module attributes {stable_mosaic.version = 11 : i64} {
  func.func @_cca_kernel(%arg0: i32, %arg1: memref<1xf32, #tpu.memory_space<smem>>, %arg2: memref<64x16xf32, #tpu.memory_space<vmem>>, %arg3: memref<64x16xf32, #tpu.memory_space<vmem>>, %arg4: memref<16x20xf32, #tpu.memory_space<vmem>>, %arg5: memref<1x20xf32, #tpu.memory_space<vmem>>, %arg6: memref<8x128xf32, #tpu.memory_space<vmem>>) attributes {dimension_semantics = [#tpu.dimension_semantics<parallel>], iteration_bounds = array<i64: 2>, scalar_prefetch = 0 : i64, scratch_operands = 0 : i64, tpu.core_type = #tpu.core_type<tc>, window_params = [{transform_indices = @transform_0, window_bounds = array<i64: 1>}, {transform_indices = @transform_1, window_bounds = array<i64: 64, 16>}, {transform_indices = @transform_2, window_bounds = array<i64: 64, 16>}, {pipeline_mode = #tpu.pipeline_mode<synchronous>, transform_indices = @transform_3, window_bounds = array<i64: 16, 20>}, {pipeline_mode = #tpu.pipeline_mode<synchronous>, transform_indices = @transform_4, window_bounds = array<i64: 1, 20>}, {transform_indices = @transform_5, window_bounds = array<i64: 8, 128>}]} {
    %c0 = arith.constant 0 : index
    %c0_0 = arith.constant 0 : index
    %0 = vector.load %arg2[%c0, %c0_0] : memref<64x16xf32, #tpu.memory_space<vmem>>, vector<64x16xf32>
    %c0_1 = arith.constant 0 : index
    %c0_2 = arith.constant 0 : index
    %1 = vector.load %arg3[%c0_1, %c0_2] : memref<64x16xf32, #tpu.memory_space<vmem>>, vector<64x16xf32>
    %c0_3 = arith.constant 0 : index
    %c0_4 = arith.constant 0 : index
    %2 = vector.load %arg4[%c0_3, %c0_4] : memref<16x20xf32, #tpu.memory_space<vmem>>, vector<16x20xf32>
    %c0_5 = arith.constant 0 : index
    %c0_6 = arith.constant 0 : index
    %3 = vector.load %arg5[%c0_5, %c0_6] : memref<1x20xf32, #tpu.memory_space<vmem>>, vector<1x20xf32>
    %cst = arith.constant dense<0.000000e+00> : vector<64x20xf32>
    %4 = tpu.matmul %0, %2, %cst {dimension_numbers = #tpu.dot_dimension_numbers<[1], [0], [0], [1], [0, 0, 1, 1], [], []>} : vector<64x16xf32>, vector<16x20xf32>, vector<64x20xf32> -> vector<64x20xf32>
    %5 = vector.broadcast %3 : vector<1x20xf32> to vector<64x20xf32>
    %6 = arith.addf %4, %5 : vector<64x20xf32>
    %cst_7 = arith.constant dense<0.000000e+00> : vector<64x20xf32>
    %7 = tpu.matmul %1, %2, %cst_7 {dimension_numbers = #tpu.dot_dimension_numbers<[1], [0], [0], [1], [0, 0, 1, 1], [], []>} : vector<64x16xf32>, vector<16x20xf32>, vector<64x20xf32> -> vector<64x20xf32>
    %8 = vector.broadcast %3 : vector<1x20xf32> to vector<64x20xf32>
    %9 = arith.addf %7, %8 : vector<64x20xf32>
    %10 = vector.extract_strided_slice %6 {offsets = [0, 0], sizes = [64, 2], strides = [1, 1]} : vector<64x20xf32> to vector<64x2xf32>
    %11 = vector.shape_cast %10 : vector<64x2xf32> to vector<8x8x2xf32>
    %12 = vector.extract_strided_slice %6 {offsets = [0, 2], sizes = [64, 2], strides = [1, 1]} : vector<64x20xf32> to vector<64x2xf32>
    %13 = vector.shape_cast %12 : vector<64x2xf32> to vector<8x8x2xf32>
    %14 = vector.extract_strided_slice %6 {offsets = [0, 4], sizes = [64, 16], strides = [1, 1]} : vector<64x20xf32> to vector<64x16xf32>
    %15 = vector.shape_cast %14 : vector<64x16xf32> to vector<8x8x16xf32>
    %16 = vector.extract_strided_slice %9 {offsets = [0, 0], sizes = [64, 2], strides = [1, 1]} : vector<64x20xf32> to vector<64x2xf32>
    %17 = vector.shape_cast %16 : vector<64x2xf32> to vector<8x8x2xf32>
    %18 = vector.extract_strided_slice %9 {offsets = [0, 2], sizes = [64, 2], strides = [1, 1]} : vector<64x20xf32> to vector<64x2xf32>
    %19 = vector.shape_cast %18 : vector<64x2xf32> to vector<8x8x2xf32>
    %20 = vector.extract_strided_slice %9 {offsets = [0, 4], sizes = [64, 16], strides = [1, 1]} : vector<64x20xf32> to vector<64x16xf32>
    %21 = vector.shape_cast %20 : vector<64x16xf32> to vector<8x8x16xf32>
    %22 = vector.extract_strided_slice %11 {offsets = [0, 0, 0], sizes = [8, 8, 1], strides = [1, 1, 1]} : vector<8x8x2xf32> to vector<8x8x1xf32>
    %23 = vector.shape_cast %22 : vector<8x8x1xf32> to vector<8x8xf32>
    %24 = vector.shape_cast %23 : vector<8x8xf32> to vector<8x8x1xf32>
    %25 = vector.extract_strided_slice %13 {offsets = [0, 0, 0], sizes = [8, 8, 1], strides = [1, 1, 1]} : vector<8x8x2xf32> to vector<8x8x1xf32>
    %26 = vector.shape_cast %25 : vector<8x8x1xf32> to vector<8x8xf32>
    %27 = vector.shape_cast %26 : vector<8x8xf32> to vector<8x1x8xf32>
    %28 = vector.broadcast %24 : vector<8x8x1xf32> to vector<8x8x8xf32>
    %29 = vector.broadcast %27 : vector<8x1x8xf32> to vector<8x8x8xf32>
    %30 = arith.mulf %28, %29 : vector<8x8x8xf32>
    %31 = vector.extract_strided_slice %11 {offsets = [0, 0, 1], sizes = [8, 8, 1], strides = [1, 1, 1]} : vector<8x8x2xf32> to vector<8x8x1xf32>
    %32 = vector.shape_cast %31 : vector<8x8x1xf32> to vector<8x8xf32>
    %33 = vector.shape_cast %32 : vector<8x8xf32> to vector<8x8x1xf32>
    %34 = vector.extract_strided_slice %13 {offsets = [0, 0, 1], sizes = [8, 8, 1], strides = [1, 1, 1]} : vector<8x8x2xf32> to vector<8x8x1xf32>
    %35 = vector.shape_cast %34 : vector<8x8x1xf32> to vector<8x8xf32>
    %36 = vector.shape_cast %35 : vector<8x8xf32> to vector<8x1x8xf32>
    %37 = vector.broadcast %33 : vector<8x8x1xf32> to vector<8x8x8xf32>
    %38 = vector.broadcast %36 : vector<8x1x8xf32> to vector<8x8x8xf32>
    %39 = arith.mulf %37, %38 : vector<8x8x8xf32>
    %40 = arith.addf %30, %39 : vector<8x8x8xf32>
    %41 = vector.extract_strided_slice %17 {offsets = [0, 0, 0], sizes = [8, 8, 1], strides = [1, 1, 1]} : vector<8x8x2xf32> to vector<8x8x1xf32>
    %42 = vector.shape_cast %41 : vector<8x8x1xf32> to vector<8x8xf32>
    %43 = vector.shape_cast %42 : vector<8x8xf32> to vector<8x8x1xf32>
    %44 = vector.extract_strided_slice %19 {offsets = [0, 0, 0], sizes = [8, 8, 1], strides = [1, 1, 1]} : vector<8x8x2xf32> to vector<8x8x1xf32>
    %45 = vector.shape_cast %44 : vector<8x8x1xf32> to vector<8x8xf32>
    %46 = vector.shape_cast %45 : vector<8x8xf32> to vector<8x1x8xf32>
    %47 = vector.broadcast %43 : vector<8x8x1xf32> to vector<8x8x8xf32>
    %48 = vector.broadcast %46 : vector<8x1x8xf32> to vector<8x8x8xf32>
    %49 = arith.mulf %47, %48 : vector<8x8x8xf32>
    %50 = vector.extract_strided_slice %17 {offsets = [0, 0, 1], sizes = [8, 8, 1], strides = [1, 1, 1]} : vector<8x8x2xf32> to vector<8x8x1xf32>
    %51 = vector.shape_cast %50 : vector<8x8x1xf32> to vector<8x8xf32>
    %52 = vector.shape_cast %51 : vector<8x8xf32> to vector<8x8x1xf32>
    %53 = vector.extract_strided_slice %19 {offsets = [0, 0, 1], sizes = [8, 8, 1], strides = [1, 1, 1]} : vector<8x8x2xf32> to vector<8x8x1xf32>
    %54 = vector.shape_cast %53 : vector<8x8x1xf32> to vector<8x8xf32>
    %55 = vector.shape_cast %54 : vector<8x8xf32> to vector<8x1x8xf32>
    %56 = vector.broadcast %52 : vector<8x8x1xf32> to vector<8x8x8xf32>
    %57 = vector.broadcast %55 : vector<8x1x8xf32> to vector<8x8x8xf32>
    %58 = arith.mulf %56, %57 : vector<8x8x8xf32>
    %59 = arith.addf %49, %58 : vector<8x8x8xf32>
    %60 = tpu.iota {dimensions = array<i32: 0>} : vector<8x8xi32>
    %61 = tpu.iota {dimensions = array<i32: 1>} : vector<8x8xi32>
    %62 = arith.cmpi eq, %60, %61 : vector<8x8xi32>
    %63 = vector.shape_cast %62 : vector<8x8xi1> to vector<1x8x8xi1>
    %cst_8 = arith.constant -1.000000e+30 : f32
    %64 = vector.shape_cast %63 : vector<1x8x8xi1> to vector<1x8x8xi1>
    %65 = vector.broadcast %64 : vector<1x8x8xi1> to vector<8x8x8xi1>
    %66 = vector.broadcast %cst_8 : f32 to vector<8x8x8xf32>
    %67 = arith.select %65, %66, %59 : vector<8x8x8xi1>, vector<8x8x8xf32>
    %cst_9 = arith.constant dense<0xFF800000> : vector<8x8xf32>
    %68 = vector.multi_reduction <maximumf>, %40, %cst_9 [2] : vector<8x8x8xf32> to vector<8x8xf32>
    %cst_10 = arith.constant dense<0xFF800000> : vector<8x8xf32>
    %69 = vector.multi_reduction <maximumf>, %67, %cst_10 [2] : vector<8x8x8xf32> to vector<8x8xf32>
    %70 = vector.shape_cast %69 : vector<8x8xf32> to vector<1x8x8xf32>
    %71 = tpu.transpose %70, [0, 2, 1] : vector<1x8x8xf32> -> vector<1x8x8xf32>
    %72 = vector.shape_cast %71 : vector<1x8x8xf32> to vector<8x8xf32>
    %73 = arith.maximumf %68, %72 : vector<8x8xf32>
    %74 = vector.shape_cast %73 : vector<8x8xf32> to vector<8x8x1xf32>
    %75 = vector.broadcast %74 : vector<8x8x1xf32> to vector<8x8x8xf32>
    %76 = arith.subf %40, %75 : vector<8x8x8xf32>
    %77 = math.exp %76 : vector<8x8x8xf32>
    %78 = vector.shape_cast %73 : vector<8x8xf32> to vector<1x8x8xf32>
    %79 = tpu.transpose %78, [0, 2, 1] : vector<1x8x8xf32> -> vector<1x8x8xf32>
    %80 = vector.shape_cast %79 : vector<1x8x8xf32> to vector<8x8xf32>
    %81 = vector.shape_cast %80 : vector<8x8xf32> to vector<8x8x1xf32>
    %82 = vector.broadcast %81 : vector<8x8x1xf32> to vector<8x8x8xf32>
    %83 = arith.subf %67, %82 : vector<8x8x8xf32>
    %84 = math.exp %83 : vector<8x8x8xf32>
    %cst_11 = arith.constant dense<0.000000e+00> : vector<8x8xf32>
    %85 = vector.multi_reduction <add>, %77, %cst_11 [2] : vector<8x8x8xf32> to vector<8x8xf32>
    %cst_12 = arith.constant dense<0.000000e+00> : vector<8x8xf32>
    %86 = vector.multi_reduction <add>, %84, %cst_12 [2] : vector<8x8x8xf32> to vector<8x8xf32>
    %87 = vector.shape_cast %86 : vector<8x8xf32> to vector<1x8x8xf32>
    %88 = tpu.transpose %87, [0, 2, 1] : vector<1x8x8xf32> -> vector<1x8x8xf32>
    %89 = vector.shape_cast %88 : vector<1x8x8xf32> to vector<8x8xf32>
    %90 = arith.addf %85, %89 : vector<8x8xf32>
    %91 = tpu.reciprocal %90 {approx = true} : vector<8x8xf32> -> vector<8x8xf32>
    %92 = arith.mulf %90, %91 : vector<8x8xf32>
    %cst_13 = arith.constant 2.000000e+00 : f32
    %93 = vector.broadcast %cst_13 : f32 to vector<8x8xf32>
    %94 = arith.subf %93, %92 : vector<8x8xf32>
    %95 = arith.mulf %91, %94 : vector<8x8xf32>
    %96 = vector.shape_cast %95 : vector<8x8xf32> to vector<8x8x1xf32>
    %97 = vector.broadcast %96 : vector<8x8x1xf32> to vector<8x8x8xf32>
    %98 = arith.mulf %77, %97 : vector<8x8x8xf32>
    %99 = vector.shape_cast %95 : vector<8x8xf32> to vector<1x8x8xf32>
    %100 = tpu.transpose %99, [0, 2, 1] : vector<1x8x8xf32> -> vector<1x8x8xf32>
    %101 = vector.shape_cast %100 : vector<1x8x8xf32> to vector<8x8xf32>
    %102 = vector.shape_cast %101 : vector<8x8xf32> to vector<8x8x1xf32>
    %103 = vector.broadcast %102 : vector<8x8x1xf32> to vector<8x8x8xf32>
    %104 = arith.mulf %84, %103 : vector<8x8x8xf32>
    "tpu.trace_start"() <{level = 10 : i32, message = "gjw,gwc->gjc"}> : () -> ()
    %cst_14 = arith.constant dense<0.000000e+00> : vector<8x8x16xf32>
    %105 = tpu.matmul %98, %15, %cst_14 {dimension_numbers = #tpu.dot_dimension_numbers<[2], [1], [1], [2], [0, 0, 0, 1, 1, 2], [0], [0]>} : vector<8x8x8xf32>, vector<8x8x16xf32>, vector<8x8x16xf32> -> vector<8x8x16xf32>
    "tpu.trace_stop"() : () -> ()
    "tpu.trace_start"() <{level = 10 : i32, message = "gih,ghc->gic"}> : () -> ()
    %cst_15 = arith.constant dense<0.000000e+00> : vector<8x8x16xf32>
    %106 = tpu.matmul %104, %21, %cst_15 {dimension_numbers = #tpu.dot_dimension_numbers<[2], [1], [1], [2], [0, 0, 0, 1, 1, 2], [0], [0]>} : vector<8x8x8xf32>, vector<8x8x16xf32>, vector<8x8x16xf32> -> vector<8x8x16xf32>
    "tpu.trace_stop"() : () -> ()
    %107 = vector.shape_cast %106 : vector<8x8x16xf32> to vector<1x8x8x16xf32>
    %108 = tpu.transpose %107, [0, 2, 1, 3] : vector<1x8x8x16xf32> -> vector<1x8x8x16xf32>
    %109 = vector.shape_cast %108 : vector<1x8x8x16xf32> to vector<8x8x16xf32>
    %c0_16 = arith.constant 0 : index
    %110 = memref.load %arg1[%c0_16] : memref<1xf32, #tpu.memory_space<smem>>
    %111 = arith.addf %109, %105 : vector<8x8x16xf32>
    %112 = vector.broadcast %110 : f32 to vector<8x8x16xf32>
    %113 = arith.mulf %112, %111 : vector<8x8x16xf32>
    %114 = vector.shape_cast %0 : vector<64x16xf32> to vector<8x8x16xf32>
    %115 = arith.addf %113, %114 : vector<8x8x16xf32>
    %116 = vector.shape_cast %115 : vector<8x8x16xf32> to vector<8x128xf32>
    %c0_17 = arith.constant 0 : index
    %c0_18 = arith.constant 0 : index
    %117 = vector.load %arg6[%c0_17, %c0_18] : memref<8x128xf32, #tpu.memory_space<vmem>>, vector<8x128xf32>
    tpu.vector_store %arg6[%c0_17, %c0_18], %116 {strides = array<i32>} : memref<8x128xf32, #tpu.memory_space<vmem>>, vector<8x128xf32>,
    return
  }
  func.func @transform_0(%arg0: i32) -> i32 {
    %c0_i32 = arith.constant 0 : i32
    %c0_i32_0 = arith.constant 0 : i32
    return %c0_i32 : i32
  }
  func.func @transform_1(%arg0: i32) -> (i32, i32) {
    %c0_i32 = arith.constant 0 : i32
    %c0_i32_0 = arith.constant 0 : i32
    return %arg0, %c0_i32 : i32, i32
  }
  func.func @transform_2(%arg0: i32) -> (i32, i32) {
    %c0_i32 = arith.constant 0 : i32
    %c0_i32_0 = arith.constant 0 : i32
    return %arg0, %c0_i32 : i32, i32
  }
  func.func @transform_3(%arg0: i32) -> (i32, i32) {
    %c0_i32 = arith.constant 0 : i32
    %c0_i32_0 = arith.constant 0 : i32
    %c0_i32_1 = arith.constant 0 : i32
    return %c0_i32, %c0_i32_0 : i32, i32
  }
  func.func @transform_4(%arg0: i32) -> (i32, i32) {
    %c0_i32 = arith.constant 0 : i32
    %c0_i32_0 = arith.constant 0 : i32
    %c0_i32_1 = arith.constant 0 : i32
    return %c0_i32, %c0_i32_0 : i32, i32
  }
  func.func @transform_5(%arg0: i32) -> (i32, i32) {
    %c0_i32 = arith.constant 0 : i32
    %c0_i32_0 = arith.constant 0 : i32
    return %arg0, %c0_i32 : i32, i32
  }
}

</mosaic_0001>

<llo_original>
// kernel: tpu_custom_call.1
$region0: #{tpu_custom_call.1}
  #allocation0 [shape = 'u32[]', space=smem, size = 0x4, offset = 0x4, fixed_abs, tag = 'smem constant byte address 0x4 - core index']
  #allocation1 [shape = 'u32[72,128]{1,0:T(1,128)}', space=vmem, size = 0x9000, scoped, tag = 'internal scratch']
  #allocation2 [shape = 'f32[1]{0:T(128)S(6)}', space=smem, size = 0x200, scoped, tag = 'scoped memory for tpu_custom_call.1']
  %s0 = inlined_call_operand.<no memory space> [shape: f32[1], index: 0, kind: input, shape index: {}]
  %s1 = inlined_call_operand.vmem [shape: f32[128,16], index: 1, kind: input, shape index: {}]
  %s2 = inlined_call_operand.vmem [shape: f32[128,16], index: 2, kind: input, shape index: {}]
  %s3 = inlined_call_operand.vmem [shape: f32[16,20], index: 3, kind: input, shape index: {}]
  %s4 = inlined_call_operand.vmem [shape: f32[1,20], index: 4, kind: input, shape index: {}]
  %s5 = inlined_call_operand.hbm [shape: f32[16,128], index: 5, kind: output, shape index: {}]
  %s6 = sld [smem:[#allocation0]]
  $region53: #{tpu_custom_call.1} parent=0
    _
  %s8 = ssub.s32 1, %s6
  %s9 = scalar_select 0, %s8, %s6
  %10 = sst [smem:[#allocation2]] %s0
  $region1: #{tpu_custom_call.1} parent=0
    #allocation3 [shape = 'u8[8192]{0}', space=vmem, size = 0x2000, scoped, tag = 'output window, operand 0']
    #allocation4 [shape = 's32[2]{0}', space=sflag, size = 0x8, scoped, tag = 'scoped memory for tpu_custom_call.1']
    %11 = vsyncpa [#allocation4], 0
    %s12 = scalar_lea.sflag [#allocation4], 1
    %13 = vsyncpa %s12, 0
    loop: start=0, step=1, limit=4
    $region2: #{tpu_custom_call.1} parent=1 // loop_pre_header
      _
    $region3: #{tpu_custom_call.1} parent=1 // loop_header
      %s15 = sphi 0, %s19
      %p16 = scmp.ge.s32.totalorder %s15, 4
      %s23 = sphi 0, %s23
      %s25 = sphi 0, %s23
      %s26 = sphi 0, %s25
      %s40 = sphi 0, %s26
      %s46 = sphi 0, %s48
      %s49 = sphi 0, %s46
      %s50 = sphi 0, %s49
      %s66 = sphi 0, %s50
      %s72 = sphi 0, %s74
      %s75 = sphi 0, %s72
      %s76 = sphi 0, %s75
      %s92 = sphi 0, %s76
      %s96 = sphi 0, %s96
      %s98 = sphi 0, %s96
      %s99 = sphi 0, %s98
      %s113 = sphi 0, %s99
      %s117 = sphi 0, %s117
      %s119 = sphi 0, %s117
      %s120 = sphi 0, %s119
      %s134 = sphi 0, %s120
      %s140 = sphi 0, %s142
      %s143 = sphi 0, %s140
      %s144 = sphi 0, %s143
      %s160 = sphi 0, %s144
    $region4: #{tpu_custom_call.1} parent=1 // loop_header_branch
      %18 = sbr.rel (%p16) target = $region8
    $region5: #{tpu_custom_call.1} parent=1 // loop_body
      %s20 = ssub.s32 %s15, 1
      %s21 = ssub.s32 %s15, 2
      %s22 = sadd.s32 %s15, 1
      %s24 = sadd.s32 %s23, 1
      %p27 = scmp.eq.s32.totalorder %s15, 1
      %p28 = scmp.ne.s32.totalorder %s23, %s25
      %p29 = scmp.eq.s32.totalorder %s15, 0
      %p30 = por %p28, %p29
      %p31 = scmp.ne.s32.totalorder %s23, %s25
      %p32 = scmp.eq.s32.totalorder %s20, 1
      %p33 = por %p31, %p32
      %p34 = scmp.ne.s32.totalorder %s25, %s26
      %p35 = scmp.eq.s32.totalorder %s20, 0
      %p36 = por %p34, %p35
      %p37 = scmp.ne.s32.totalorder %s25, %s26
      %p38 = scmp.eq.s32.totalorder %s21, 1
      %p39 = por %p37, %p38
      %p41 = scmp.ne.s32.totalorder %s26, %s40
      %p42 = scmp.eq.s32.totalorder %s21, 0
      %p43 = por %p41, %p42
      %s44 = ssub.s32 %s15, %s22
      %p45 = scmp.eq.s32.totalorder %s44, 0
      %s47 = sadd.s32 %s46, 1
      %s48 = scalar_select %p45, %s46, %s47
      %p51 = pneg %p45
      %p52 = scmp.eq.s32.totalorder %s15, 1
      %p53 = por %p51, %p52
      %p54 = scmp.ne.s32.totalorder %s46, %s49
      %p55 = scmp.eq.s32.totalorder %s15, 0
      %p56 = por %p54, %p55
      %p57 = scmp.ne.s32.totalorder %s46, %s49
      %p58 = scmp.eq.s32.totalorder %s20, 1
      %p59 = por %p57, %p58
      %p60 = scmp.ne.s32.totalorder %s49, %s50
      %p61 = scmp.eq.s32.totalorder %s20, 0
      %p62 = por %p60, %p61
      %p63 = scmp.ne.s32.totalorder %s49, %s50
      %p64 = scmp.eq.s32.totalorder %s21, 1
      %p65 = por %p63, %p64
      %p67 = scmp.ne.s32.totalorder %s50, %s66
      %p68 = scmp.eq.s32.totalorder %s21, 0
      %p69 = por %p67, %p68
      %s70 = ssub.s32 %s15, %s22
      %p71 = scmp.eq.s32.totalorder %s70, 0
      %s73 = sadd.s32 %s72, 1
      %s74 = scalar_select %p71, %s72, %s73
      %p77 = pneg %p71
      %p78 = scmp.eq.s32.totalorder %s15, 1
      %p79 = por %p77, %p78
      %p80 = scmp.ne.s32.totalorder %s72, %s75
      %p81 = scmp.eq.s32.totalorder %s15, 0
      %p82 = por %p80, %p81
      %p83 = scmp.ne.s32.totalorder %s72, %s75
      %p84 = scmp.eq.s32.totalorder %s20, 1
      %p85 = por %p83, %p84
      %p86 = scmp.ne.s32.totalorder %s75, %s76
      %p87 = scmp.eq.s32.totalorder %s20, 0
      %p88 = por %p86, %p87
      %p89 = scmp.ne.s32.totalorder %s75, %s76
      %p90 = scmp.eq.s32.totalorder %s21, 1
      %p91 = por %p89, %p90
      %p93 = scmp.ne.s32.totalorder %s76, %s92
      %p94 = scmp.eq.s32.totalorder %s21, 0
      %p95 = por %p93, %p94
      %s97 = sadd.s32 %s96, 1
      %p100 = scmp.eq.s32.totalorder %s15, 1
      %p101 = scmp.ne.s32.totalorder %s96, %s98
      %p102 = scmp.eq.s32.totalorder %s15, 0
      %p103 = por %p101, %p102
      %p104 = scmp.ne.s32.totalorder %s96, %s98
      %p105 = scmp.eq.s32.totalorder %s20, 1
      %p106 = por %p104, %p105
      %p107 = scmp.ne.s32.totalorder %s98, %s99
      %p108 = scmp.eq.s32.totalorder %s20, 0
      %p109 = por %p107, %p108
      %p110 = scmp.ne.s32.totalorder %s98, %s99
      %p111 = scmp.eq.s32.totalorder %s21, 1
      %p112 = por %p110, %p111
      %p114 = scmp.ne.s32.totalorder %s99, %s113
      %p115 = scmp.eq.s32.totalorder %s21, 0
      %p116 = por %p114, %p115
      %s118 = sadd.s32 %s117, 1
      %p121 = scmp.eq.s32.totalorder %s15, 1
      %p122 = scmp.ne.s32.totalorder %s117, %s119
      %p123 = scmp.eq.s32.totalorder %s15, 0
      %p124 = por %p122, %p123
      %p125 = scmp.ne.s32.totalorder %s117, %s119
      %p126 = scmp.eq.s32.totalorder %s20, 1
      %p127 = por %p125, %p126
      %p128 = scmp.ne.s32.totalorder %s119, %s120
      %p129 = scmp.eq.s32.totalorder %s20, 0
      %p130 = por %p128, %p129
      %p131 = scmp.ne.s32.totalorder %s119, %s120
      %p132 = scmp.eq.s32.totalorder %s21, 1
      %p133 = por %p131, %p132
      %p135 = scmp.ne.s32.totalorder %s120, %s134
      %p136 = scmp.eq.s32.totalorder %s21, 0
      %p137 = por %p135, %p136
      %s138 = ssub.s32 %s15, %s22
      %p139 = scmp.eq.s32.totalorder %s138, 0
      %s141 = sadd.s32 %s140, 1
      %s142 = scalar_select %p139, %s140, %s141
      %p145 = pneg %p139
      %p146 = scmp.eq.s32.totalorder %s15, 1
      %p147 = por %p145, %p146
      %p148 = scmp.ne.s32.totalorder %s140, %s143
      %p149 = scmp.eq.s32.totalorder %s15, 0
      %p150 = por %p148, %p149
      %p151 = scmp.ne.s32.totalorder %s140, %s143
      %p152 = scmp.eq.s32.totalorder %s20, 1
      %p153 = por %p151, %p152
      %p154 = scmp.ne.s32.totalorder %s143, %s144
      %p155 = scmp.eq.s32.totalorder %s20, 0
      %p156 = por %p154, %p155
      %p157 = scmp.ne.s32.totalorder %s143, %s144
      %p158 = scmp.eq.s32.totalorder %s21, 1
      %p159 = por %p157, %p158
      %p161 = scmp.ne.s32.totalorder %s144, %s160
      %p162 = scmp.eq.s32.totalorder %s21, 0
      %p163 = por %p161, %p162
      %p164 = scmp.le.s32.totalorder 1, %s15
      %p165 = scmp.lt.s32.totalorder %s15, 3
      %p166 = pnand %p164, %p165
      %p167 = pneg %p166
      // Predicated region
      $region9: #{tpu_custom_call.1} parent=5 // pred_check
        _
      $region10: #{tpu_custom_call.1} parent=5 // pred_check_branch
        %169 = sbr.rel (%p166) target = $region12
      $region11: #{tpu_custom_call.1} parent=5 // pred_region
        %s170 = ssub.s32 %s15, 1
        // Predicated region
        $region13: #{tpu_custom_call.1} parent=11 // pred_check
          %p171 = pneg %p36
        $region14: #{tpu_custom_call.1} parent=11 // pred_check_branch
          %173 = sbr.rel (%p171) target = $region16
        $region15: #{tpu_custom_call.1} parent=11 // pred_region
          _
        $region16: #{tpu_custom_call.1} parent=11 // pred_fallthru
          _
        // Predicated region
        $region17: #{tpu_custom_call.1} parent=11 // pred_check
          %p174 = pneg %p109
        $region18: #{tpu_custom_call.1} parent=11 // pred_check_branch
          %176 = sbr.rel (%p174) target = $region20
        $region19: #{tpu_custom_call.1} parent=11 // pred_region
          _
        $region20: #{tpu_custom_call.1} parent=11 // pred_fallthru
          _
        // Predicated region
        $region21: #{tpu_custom_call.1} parent=11 // pred_check
          %p177 = pneg %p130
        $region22: #{tpu_custom_call.1} parent=11 // pred_check_branch
          %179 = sbr.rel (%p177) target = $region24
        $region23: #{tpu_custom_call.1} parent=11 // pred_region
          _
        $region24: #{tpu_custom_call.1} parent=11 // pred_fallthru
          _
      $region12: #{tpu_custom_call.1} parent=5 // pred_fallthru
        _
      %p180 = scmp.lt.s32.totalorder %s15, 2
      // Predicated region
      $region25: #{tpu_custom_call.1} parent=5 // pred_check
        %p181 = pneg %p180
      $region26: #{tpu_custom_call.1} parent=5 // pred_check_branch
        %183 = sbr.rel (%p181) target = $region28
      $region27: #{tpu_custom_call.1} parent=5 // pred_region
        // Predicated region
        $region29: #{tpu_custom_call.1} parent=27 // pred_check
          %p184 = pneg %p56
        $region30: #{tpu_custom_call.1} parent=27 // pred_check_branch
          %186 = sbr.rel (%p184) target = $region32
        $region31: #{tpu_custom_call.1} parent=27 // pred_region
          %s187 = smul.u32 8, %s15
          %p188 = scmp.lt.s32.totalorder %s187, 15
          %s189 = scalar_select %p188, %s187, 15
          %s190 = smul.addr %s189, 8
          %s191 = scalar_lea.vmem %s1, %s190
          %s192 = smul.u32 8, %s15
        $region32: #{tpu_custom_call.1} parent=27 // pred_fallthru
          _
        // Predicated region
        $region33: #{tpu_custom_call.1} parent=27 // pred_check
          %p193 = pneg %p82
        $region34: #{tpu_custom_call.1} parent=27 // pred_check_branch
          %195 = sbr.rel (%p193) target = $region36
        $region35: #{tpu_custom_call.1} parent=27 // pred_region
          %s196 = smul.u32 8, %s15
          %p197 = scmp.lt.s32.totalorder %s196, 15
          %s198 = scalar_select %p197, %s196, 15
          %s199 = smul.addr %s198, 8
          %s200 = scalar_lea.vmem %s2, %s199
          %s201 = smul.u32 8, %s15
        $region36: #{tpu_custom_call.1} parent=27 // pred_fallthru
          _
      $region28: #{tpu_custom_call.1} parent=5 // pred_fallthru
        _
      %p202 = scmp.le.s32.totalorder 1, %s15
      %p203 = scmp.lt.s32.totalorder %s15, 3
      %p204 = pnand %p202, %p203
      %p205 = pneg %p204
      // Predicated region
      $region37: #{tpu_custom_call.1} parent=5 // pred_check
        _
      $region38: #{tpu_custom_call.1} parent=5 // pred_check_branch
        %207 = sbr.rel (%p204) target = $region40
      $region39: #{tpu_custom_call.1} parent=5 // pred_region
        %s208 = ssub.s32 %s15, 1
        %p209 = pneg %p36
        %p210 = pneg %p33
        %s211 = smul.u32 8, %s20
        %p212 = scmp.lt.s32.totalorder %s211, 15
        %s213 = scalar_select %p212, %s211, 15
        %s214 = smul.addr %s213, 8
        %s215 = scalar_lea.vmem %s1, %s214
        %p216 = pneg %p62
        %p217 = pneg %p59
        %s218 = smul.u32 8, %s20
        %p219 = scmp.lt.s32.totalorder %s218, 15
        %s220 = scalar_select %p219, %s218, 15
        %s221 = smul.addr %s220, 8
        %s222 = scalar_lea.vmem %s2, %s221
        %p223 = pneg %p88
        %p224 = pneg %p85
        %p225 = pneg %p109
        %p226 = pneg %p106
        %p227 = pneg %p130
        %p228 = pneg %p127
        %p229 = pneg %p156
        %p230 = pneg %p153
        %s231 = sand.u32 %s143, 1
        %s232 = scalar_lea.sflag [#allocation4], %s231
        %s233 = sand.u32 %s143, 1
        %s234 = smul.addr %s233, 8
        %s235 = scalar_lea.vmem [#allocation3], %s234
        %s236 = smul.u32 8, %s20
        %p237 = scmp.lt.s32.totalorder %s236, 15
        %s238 = scalar_select %p237, %s236, 15
        %s239 = smul.addr %s238, 8
        %s240 = scalar_lea.vmem %s1, %s239
        %s241 = smul.u32 8, %s20
        %s242 = smul.u32 8, %s20
        %p243 = scmp.lt.s32.totalorder %s242, 15
        %s244 = scalar_select %p243, %s242, 15
        %s245 = smul.addr %s244, 8
        %s246 = scalar_lea.vmem %s2, %s245
        %s247 = smul.u32 8, %s20
        %v248 = vld [vmem:[%s240] sm:$0xff]
        %v249 = vld [vmem:[%s240 + $0x8] sm:$0xff]
        %v250 = vld [vmem:[%s240 + $0x10] sm:$0xff]
        %v251 = vld [vmem:[%s240 + $0x18] sm:$0xff]
        %v252 = vld [vmem:[%s240 + $0x20] sm:$0xff]
        %v253 = vld [vmem:[%s240 + $0x28] sm:$0xff]
        %v254 = vld [vmem:[%s240 + $0x30] sm:$0xff]
        %v255 = vld [vmem:[%s240 + $0x38] sm:$0xff]
        %v256 = vld [vmem:[%s246] sm:$0xff]
        %v257 = vld [vmem:[%s246 + $0x8] sm:$0xff]
        %v258 = vld [vmem:[%s246 + $0x10] sm:$0xff]
        %v259 = vld [vmem:[%s246 + $0x18] sm:$0xff]
        %v260 = vld [vmem:[%s246 + $0x20] sm:$0xff]
        %v261 = vld [vmem:[%s246 + $0x28] sm:$0xff]
        %v262 = vld [vmem:[%s246 + $0x30] sm:$0xff]
        %v263 = vld [vmem:[%s246 + $0x38] sm:$0xff]
        %v264 = vld [vmem:[%s3] sm:$0xff]
        %v265 = vld [vmem:[%s3 + $0x8] sm:$0xff]
        %v266 = vld [vmem:[%s4] sm:$0x1]
        %v268 = vperm.slane %v266, 0
        %vm270 = vcmask 130048
        %v272 = vsel %vm270, %v248, 0
        %v275 = vsel %vm270, %v249, 0
        %v278 = vsel %vm270, %v250, 0
        %v281 = vsel %vm270, %v251, 0
        %v284 = vsel %vm270, %v252, 0
        %v287 = vsel %vm270, %v253, 0
        %v290 = vsel %vm270, %v254, 0
        %v293 = vsel %vm270, %v255, 0
        %295 = vmatpush.msra.mxu0 0.0
        %296 = vmatpush.msra.mxu0 0.0
        %297 = vmatpush.msra.mxu0 0.0
        %298 = vmatpush.msra.mxu0 0.0
        %299 = vmatpush.msra.mxu0 0.0
        %300 = vmatpush.msra.mxu0 0.0
        %301 = vmatpush.msra.mxu0 0.0
        %302 = vmatpush.msra.mxu0 0.0
        %303 = vmatpush.msra.mxu0 0.0
        %304 = vmatpush.msra.mxu0 0.0
        %305 = vmatpush.msra.mxu0 0.0
        %306 = vmatpush.msra.mxu0 0.0
        %307 = vmatpush.msra.mxu0 0.0
        %308 = vmatpush.msra.mxu0 0.0
        %309 = vmatpush.msra.mxu0 %v265
        %310 = vmatpush.msra.mxu0 %v264
        %311 = vmatmul.f32.gmra.mxu0 %v272
        %v312 = vpop.f32.mrf.mxu0
        %v313 = vadd.f32 %v268, %v312
        %314 = vmatmul.f32.gmra.mxu0 %v275
        %v315 = vpop.f32.mrf.mxu0
        %v316 = vadd.f32 %v268, %v315
        %317 = vmatmul.f32.gmra.mxu0 %v278
        %v318 = vpop.f32.mrf.mxu0
        %v319 = vadd.f32 %v268, %v318
        %320 = vmatmul.f32.gmra.mxu0 %v281
        %v321 = vpop.f32.mrf.mxu0
        %v322 = vadd.f32 %v268, %v321
        %323 = vmatmul.f32.gmra.mxu0 %v284
        %v324 = vpop.f32.mrf.mxu0
        %v325 = vadd.f32 %v268, %v324
        %326 = vmatmul.f32.gmra.mxu0 %v287
        %v327 = vpop.f32.mrf.mxu0
        %v328 = vadd.f32 %v268, %v327
        %329 = vmatmul.f32.gmra.mxu0 %v290
        %v330 = vpop.f32.mrf.mxu0
        %v331 = vadd.f32 %v268, %v330
        %332 = vmatmul.f32.gmra.mxu0 %v293
        %v333 = vpop.f32.mrf.mxu0
        %v334 = vadd.f32 %v268, %v333
        %335 = vdwg.mxu0
        %v337 = vsel %vm270, %v256, 0
        %v340 = vsel %vm270, %v257, 0
        %v343 = vsel %vm270, %v258, 0
        %v346 = vsel %vm270, %v259, 0
        %v349 = vsel %vm270, %v260, 0
        %v352 = vsel %vm270, %v261, 0
        %v355 = vsel %vm270, %v262, 0
        %v358 = vsel %vm270, %v263, 0
        %360 = vmatpush.msra.mxu0 0.0
        %361 = vmatpush.msra.mxu0 0.0
        %362 = vmatpush.msra.mxu0 0.0
        %363 = vmatpush.msra.mxu0 0.0
        %364 = vmatpush.msra.mxu0 0.0
        %365 = vmatpush.msra.mxu0 0.0
        %366 = vmatpush.msra.mxu0 0.0
        %367 = vmatpush.msra.mxu0 0.0
        %368 = vmatpush.msra.mxu0 0.0
        %369 = vmatpush.msra.mxu0 0.0
        %370 = vmatpush.msra.mxu0 0.0
        %371 = vmatpush.msra.mxu0 0.0
        %372 = vmatpush.msra.mxu0 0.0
        %373 = vmatpush.msra.mxu0 0.0
        %374 = vmatpush.msra.mxu0 %v265
        %375 = vmatpush.msra.mxu0 %v264
        %376 = vmatmul.f32.gmra.mxu0 %v337
        %v377 = vpop.f32.mrf.mxu0
        %v378 = vadd.f32 %v268, %v377
        %379 = vmatmul.f32.gmra.mxu0 %v340
        %v380 = vpop.f32.mrf.mxu0
        %v381 = vadd.f32 %v268, %v380
        %382 = vmatmul.f32.gmra.mxu0 %v343
        %v383 = vpop.f32.mrf.mxu0
        %v384 = vadd.f32 %v268, %v383
        %385 = vmatmul.f32.gmra.mxu0 %v346
        %v386 = vpop.f32.mrf.mxu0
        %v387 = vadd.f32 %v268, %v386
        %388 = vmatmul.f32.gmra.mxu0 %v349
        %v389 = vpop.f32.mrf.mxu0
        %v390 = vadd.f32 %v268, %v389
        %391 = vmatmul.f32.gmra.mxu0 %v352
        %v392 = vpop.f32.mrf.mxu0
        %v393 = vadd.f32 %v268, %v392
        %394 = vmatmul.f32.gmra.mxu0 %v355
        %v395 = vpop.f32.mrf.mxu0
        %v396 = vadd.f32 %v268, %v395
        %397 = vmatmul.f32.gmra.mxu0 %v358
        %v398 = vpop.f32.mrf.mxu0
        %v399 = vadd.f32 %v268, %v398
        %400 = vdwg.mxu0
        %402 = vset.pattern.permute.xlu0 0
        %403 = vperm.xlu0 %402, %v313
        %v404 = vpop.permute.xlu0 %403
        %407 = vset.pattern.permute.xlu0 0
        %408 = vperm.xlu0 %407, %v316
        %v409 = vpop.permute.xlu0 %408
        %412 = vset.pattern.permute.xlu0 0
        %413 = vperm.xlu0 %412, %v319
        %v414 = vpop.permute.xlu0 %413
        %417 = vset.pattern.permute.xlu0 0
        %418 = vperm.xlu0 %417, %v322
        %v419 = vpop.permute.xlu0 %418
        %422 = vset.pattern.permute.xlu0 0
        %423 = vperm.xlu0 %422, %v325
        %v424 = vpop.permute.xlu0 %423
        %427 = vset.pattern.permute.xlu0 0
        %428 = vperm.xlu0 %427, %v328
        %v429 = vpop.permute.xlu0 %428
        %432 = vset.pattern.permute.xlu0 0
        %433 = vperm.xlu0 %432, %v331
        %v434 = vpop.permute.xlu0 %433
        %437 = vset.pattern.permute.xlu0 0
        %438 = vperm.xlu0 %437, %v334
        %v439 = vpop.permute.xlu0 %438
        %441 = vset.pattern.permute.xlu0 2
        %442 = vperm.xlu0 %441, %v313
        %v443 = vpop.permute.xlu0 %442
        %444 = vset.pattern.permute.xlu0 2
        %445 = vperm.xlu0 %444, %v316
        %v446 = vpop.permute.xlu0 %445
        %447 = vset.pattern.permute.xlu0 2
        %448 = vperm.xlu0 %447, %v319
        %v449 = vpop.permute.xlu0 %448
        %450 = vset.pattern.permute.xlu0 2
        %451 = vperm.xlu0 %450, %v322
        %v452 = vpop.permute.xlu0 %451
        %453 = vset.pattern.permute.xlu0 2
        %454 = vperm.xlu0 %453, %v325
        %v455 = vpop.permute.xlu0 %454
        %456 = vset.pattern.permute.xlu0 2
        %457 = vperm.xlu0 %456, %v328
        %v458 = vpop.permute.xlu0 %457
        %459 = vset.pattern.permute.xlu0 2
        %460 = vperm.xlu0 %459, %v331
        %v461 = vpop.permute.xlu0 %460
        %462 = vset.pattern.permute.xlu0 2
        %463 = vperm.xlu0 %462, %v334
        %v464 = vpop.permute.xlu0 %463
        %v465 = vlaneseq
        %v466 = vand.u32 %v465, 127
        %v467 = vperm.slane %v443, %v466
        %v468 = vperm.slane %v446, %v466
        %v469 = vperm.slane %v449, %v466
        %v470 = vperm.slane %v452, %v466
        %v471 = vperm.slane %v455, %v466
        %v472 = vperm.slane %v458, %v466
        %v473 = vperm.slane %v461, %v466
        %v474 = vperm.slane %v464, %v466
        %vm475 = vcmask 1041409
        %vm476 = vcmask 1042434
        %v477 = vsel %vm476, %v467, %v467
        %vm478 = vcmask 1043459
        %v479 = vsel %vm478, %v467, %v477
        %vm480 = vcmask 1044484
        %v481 = vsel %vm480, %v467, %v479
        %vm482 = vcmask 1045509
        %v483 = vsel %vm482, %v467, %v481
        %vm484 = vcmask 1046534
        %v485 = vsel %vm484, %v467, %v483
        %vm486 = vcmask 1047559
        %v487 = vsel %vm486, %v467, %v485
        %v488 = vsel %vm476, %v468, %v468
        %v489 = vsel %vm478, %v468, %v488
        %v490 = vsel %vm480, %v468, %v489
        %v491 = vsel %vm482, %v468, %v490
        %v492 = vsel %vm484, %v468, %v491
        %v493 = vsel %vm486, %v468, %v492
        %v494 = vsel %vm476, %v469, %v469
        %v495 = vsel %vm478, %v469, %v494
        %v496 = vsel %vm480, %v469, %v495
        %v497 = vsel %vm482, %v469, %v496
        %v498 = vsel %vm484, %v469, %v497
        %v499 = vsel %vm486, %v469, %v498
        %v500 = vsel %vm476, %v470, %v470
        %v501 = vsel %vm478, %v470, %v500
        %v502 = vsel %vm480, %v470, %v501
        %v503 = vsel %vm482, %v470, %v502
        %v504 = vsel %vm484, %v470, %v503
        %v505 = vsel %vm486, %v470, %v504
        %v506 = vsel %vm476, %v471, %v471
        %v507 = vsel %vm478, %v471, %v506
        %v508 = vsel %vm480, %v471, %v507
        %v509 = vsel %vm482, %v471, %v508
        %v510 = vsel %vm484, %v471, %v509
        %v511 = vsel %vm486, %v471, %v510
        %v512 = vsel %vm476, %v472, %v472
        %v513 = vsel %vm478, %v472, %v512
        %v514 = vsel %vm480, %v472, %v513
        %v515 = vsel %vm482, %v472, %v514
        %v516 = vsel %vm484, %v472, %v515
        %v517 = vsel %vm486, %v472, %v516
        %v518 = vsel %vm476, %v473, %v473
        %v519 = vsel %vm478, %v473, %v518
        %v520 = vsel %vm480, %v473, %v519
        %v521 = vsel %vm482, %v473, %v520
        %v522 = vsel %vm484, %v473, %v521
        %v523 = vsel %vm486, %v473, %v522
        %v524 = vsel %vm476, %v474, %v474
        %v525 = vsel %vm478, %v474, %v524
        %v526 = vsel %vm480, %v474, %v525
        %v527 = vsel %vm482, %v474, %v526
        %v528 = vsel %vm484, %v474, %v527
        %v529 = vsel %vm486, %v474, %v528
        %v538 = vmul.f32 %v404, %v487
        %v539 = vmul.f32 %v409, %v493
        %v540 = vmul.f32 %v414, %v499
        %v541 = vmul.f32 %v419, %v505
        %v542 = vmul.f32 %v424, %v511
        %v543 = vmul.f32 %v429, %v517
        %v544 = vmul.f32 %v434, %v523
        %v545 = vmul.f32 %v439, %v529
        %546 = vset.pattern.permute.xlu0 1
        %547 = vperm.xlu0 %546, %v313
        %v548 = vpop.permute.xlu0 %547
        %550 = vset.pattern.permute.xlu0 1
        %551 = vperm.xlu0 %550, %v316
        %v552 = vpop.permute.xlu0 %551
        %554 = vset.pattern.permute.xlu0 1
        %555 = vperm.xlu0 %554, %v319
        %v556 = vpop.permute.xlu0 %555
        %558 = vset.pattern.permute.xlu0 1
        %559 = vperm.xlu0 %558, %v322
        %v560 = vpop.permute.xlu0 %559
        %562 = vset.pattern.permute.xlu0 1
        %563 = vperm.xlu0 %562, %v325
        %v564 = vpop.permute.xlu0 %563
        %566 = vset.pattern.permute.xlu0 1
        %567 = vperm.xlu0 %566, %v328
        %v568 = vpop.permute.xlu0 %567
        %570 = vset.pattern.permute.xlu0 1
        %571 = vperm.xlu0 %570, %v331
        %v572 = vpop.permute.xlu0 %571
        %574 = vset.pattern.permute.xlu0 1
        %575 = vperm.xlu0 %574, %v334
        %v576 = vpop.permute.xlu0 %575
        %578 = vset.pattern.permute.xlu0 3
        %579 = vperm.xlu0 %578, %v313
        %v580 = vpop.permute.xlu0 %579
        %581 = vset.pattern.permute.xlu0 3
        %582 = vperm.xlu0 %581, %v316
        %v583 = vpop.permute.xlu0 %582
        %584 = vset.pattern.permute.xlu0 3
        %585 = vperm.xlu0 %584, %v319
        %v586 = vpop.permute.xlu0 %585
        %587 = vset.pattern.permute.xlu0 3
        %588 = vperm.xlu0 %587, %v322
        %v589 = vpop.permute.xlu0 %588
        %590 = vset.pattern.permute.xlu0 3
        %591 = vperm.xlu0 %590, %v325
        %v592 = vpop.permute.xlu0 %591
        %593 = vset.pattern.permute.xlu0 3
        %594 = vperm.xlu0 %593, %v328
        %v595 = vpop.permute.xlu0 %594
        %596 = vset.pattern.permute.xlu0 3
        %597 = vperm.xlu0 %596, %v331
        %v598 = vpop.permute.xlu0 %597
        %599 = vset.pattern.permute.xlu0 3
        %600 = vperm.xlu0 %599, %v334
        %v601 = vpop.permute.xlu0 %600
        %v602 = vperm.slane %v580, %v466
        %v603 = vperm.slane %v583, %v466
        %v604 = vperm.slane %v586, %v466
        %v605 = vperm.slane %v589, %v466
        %v606 = vperm.slane %v592, %v466
        %v607 = vperm.slane %v595, %v466
        %v608 = vperm.slane %v598, %v466
        %v609 = vperm.slane %v601, %v466
        %v610 = vsel %vm476, %v602, %v602
        %v611 = vsel %vm478, %v602, %v610
        %v612 = vsel %vm480, %v602, %v611
        %v613 = vsel %vm482, %v602, %v612
        %v614 = vsel %vm484, %v602, %v613
        %v615 = vsel %vm486, %v602, %v614
        %v616 = vsel %vm476, %v603, %v603
        %v617 = vsel %vm478, %v603, %v616
        %v618 = vsel %vm480, %v603, %v617
        %v619 = vsel %vm482, %v603, %v618
        %v620 = vsel %vm484, %v603, %v619
        %v621 = vsel %vm486, %v603, %v620
        %v622 = vsel %vm476, %v604, %v604
        %v623 = vsel %vm478, %v604, %v622
        %v624 = vsel %vm480, %v604, %v623
        %v625 = vsel %vm482, %v604, %v624
        %v626 = vsel %vm484, %v604, %v625
        %v627 = vsel %vm486, %v604, %v626
        %v628 = vsel %vm476, %v605, %v605
        %v629 = vsel %vm478, %v605, %v628
        %v630 = vsel %vm480, %v605, %v629
        %v631 = vsel %vm482, %v605, %v630
        %v632 = vsel %vm484, %v605, %v631
        %v633 = vsel %vm486, %v605, %v632
        %v634 = vsel %vm476, %v606, %v606
        %v635 = vsel %vm478, %v606, %v634
        %v636 = vsel %vm480, %v606, %v635
        %v637 = vsel %vm482, %v606, %v636
        %v638 = vsel %vm484, %v606, %v637
        %v639 = vsel %vm486, %v606, %v638
        %v640 = vsel %vm476, %v607, %v607
        %v641 = vsel %vm478, %v607, %v640
        %v642 = vsel %vm480, %v607, %v641
        %v643 = vsel %vm482, %v607, %v642
        %v644 = vsel %vm484, %v607, %v643
        %v645 = vsel %vm486, %v607, %v644
        %v646 = vsel %vm476, %v608, %v608
        %v647 = vsel %vm478, %v608, %v646
        %v648 = vsel %vm480, %v608, %v647
        %v649 = vsel %vm482, %v608, %v648
        %v650 = vsel %vm484, %v608, %v649
        %v651 = vsel %vm486, %v608, %v650
        %v652 = vsel %vm476, %v609, %v609
        %v653 = vsel %vm478, %v609, %v652
        %v654 = vsel %vm480, %v609, %v653
        %v655 = vsel %vm482, %v609, %v654
        %v656 = vsel %vm484, %v609, %v655
        %v657 = vsel %vm486, %v609, %v656
        %v666 = vmul.f32 %v548, %v615
        %v667 = vmul.f32 %v552, %v621
        %v668 = vmul.f32 %v556, %v627
        %v669 = vmul.f32 %v560, %v633
        %v670 = vmul.f32 %v564, %v639
        %v671 = vmul.f32 %v568, %v645
        %v672 = vmul.f32 %v572, %v651
        %v673 = vmul.f32 %v576, %v657
        %v674 = vadd.f32 %v538, %v666
        %v675 = vadd.f32 %v539, %v667
        %v676 = vadd.f32 %v540, %v668
        %v677 = vadd.f32 %v541, %v669
        %v678 = vadd.f32 %v542, %v670
        %v679 = vadd.f32 %v543, %v671
        %v680 = vadd.f32 %v544, %v672
        %v681 = vadd.f32 %v545, %v673
        %683 = vset.pattern.permute.xlu0 0
        %684 = vperm.xlu0 %683, %v378
        %v685 = vpop.permute.xlu0 %684
        %688 = vset.pattern.permute.xlu0 0
        %689 = vperm.xlu0 %688, %v381
        %v690 = vpop.permute.xlu0 %689
        %693 = vset.pattern.permute.xlu0 0
        %694 = vperm.xlu0 %693, %v384
        %v695 = vpop.permute.xlu0 %694
        %698 = vset.pattern.permute.xlu0 0
        %699 = vperm.xlu0 %698, %v387
        %v700 = vpop.permute.xlu0 %699
        %703 = vset.pattern.permute.xlu0 0
        %704 = vperm.xlu0 %703, %v390
        %v705 = vpop.permute.xlu0 %704
        %708 = vset.pattern.permute.xlu0 0
        %709 = vperm.xlu0 %708, %v393
        %v710 = vpop.permute.xlu0 %709
        %713 = vset.pattern.permute.xlu0 0
        %714 = vperm.xlu0 %713, %v396
        %v715 = vpop.permute.xlu0 %714
        %718 = vset.pattern.permute.xlu0 0
        %719 = vperm.xlu0 %718, %v399
        %v720 = vpop.permute.xlu0 %719
        %722 = vset.pattern.permute.xlu0 2
        %723 = vperm.xlu0 %722, %v378
        %v724 = vpop.permute.xlu0 %723
        %725 = vset.pattern.permute.xlu0 2
        %726 = vperm.xlu0 %725, %v381
        %v727 = vpop.permute.xlu0 %726
        %728 = vset.pattern.permute.xlu0 2
        %729 = vperm.xlu0 %728, %v384
        %v730 = vpop.permute.xlu0 %729
        %731 = vset.pattern.permute.xlu0 2
        %732 = vperm.xlu0 %731, %v387
        %v733 = vpop.permute.xlu0 %732
        %734 = vset.pattern.permute.xlu0 2
        %735 = vperm.xlu0 %734, %v390
        %v736 = vpop.permute.xlu0 %735
        %737 = vset.pattern.permute.xlu0 2
        %738 = vperm.xlu0 %737, %v393
        %v739 = vpop.permute.xlu0 %738
        %740 = vset.pattern.permute.xlu0 2
        %741 = vperm.xlu0 %740, %v396
        %v742 = vpop.permute.xlu0 %741
        %743 = vset.pattern.permute.xlu0 2
        %744 = vperm.xlu0 %743, %v399
        %v745 = vpop.permute.xlu0 %744
        %v746 = vperm.slane %v724, %v466
        %v747 = vperm.slane %v727, %v466
        %v748 = vperm.slane %v730, %v466
        %v749 = vperm.slane %v733, %v466
        %v750 = vperm.slane %v736, %v466
        %v751 = vperm.slane %v739, %v466
        %v752 = vperm.slane %v742, %v466
        %v753 = vperm.slane %v745, %v466
        %v754 = vsel %vm476, %v746, %v746
        %v755 = vsel %vm478, %v746, %v754
        %v756 = vsel %vm480, %v746, %v755
        %v757 = vsel %vm482, %v746, %v756
        %v758 = vsel %vm484, %v746, %v757
        %v759 = vsel %vm486, %v746, %v758
        %v760 = vsel %vm476, %v747, %v747
        %v761 = vsel %vm478, %v747, %v760
        %v762 = vsel %vm480, %v747, %v761
        %v763 = vsel %vm482, %v747, %v762
        %v764 = vsel %vm484, %v747, %v763
        %v765 = vsel %vm486, %v747, %v764
        %v766 = vsel %vm476, %v748, %v748
        %v767 = vsel %vm478, %v748, %v766
        %v768 = vsel %vm480, %v748, %v767
        %v769 = vsel %vm482, %v748, %v768
        %v770 = vsel %vm484, %v748, %v769
        %v771 = vsel %vm486, %v748, %v770
        %v772 = vsel %vm476, %v749, %v749
        %v773 = vsel %vm478, %v749, %v772
        %v774 = vsel %vm480, %v749, %v773
        %v775 = vsel %vm482, %v749, %v774
        %v776 = vsel %vm484, %v749, %v775
        %v777 = vsel %vm486, %v749, %v776
        %v778 = vsel %vm476, %v750, %v750
        %v779 = vsel %vm478, %v750, %v778
        %v780 = vsel %vm480, %v750, %v779
        %v781 = vsel %vm482, %v750, %v780
        %v782 = vsel %vm484, %v750, %v781
        %v783 = vsel %vm486, %v750, %v782
        %v784 = vsel %vm476, %v751, %v751
        %v785 = vsel %vm478, %v751, %v784
        %v786 = vsel %vm480, %v751, %v785
        %v787 = vsel %vm482, %v751, %v786
        %v788 = vsel %vm484, %v751, %v787
        %v789 = vsel %vm486, %v751, %v788
        %v790 = vsel %vm476, %v752, %v752
        %v791 = vsel %vm478, %v752, %v790
        %v792 = vsel %vm480, %v752, %v791
        %v793 = vsel %vm482, %v752, %v792
        %v794 = vsel %vm484, %v752, %v793
        %v795 = vsel %vm486, %v752, %v794
        %v796 = vsel %vm476, %v753, %v753
        %v797 = vsel %vm478, %v753, %v796
        %v798 = vsel %vm480, %v753, %v797
        %v799 = vsel %vm482, %v753, %v798
        %v800 = vsel %vm484, %v753, %v799
        %v801 = vsel %vm486, %v753, %v800
        %v810 = vmul.f32 %v685, %v759
        %v811 = vmul.f32 %v690, %v765
        %v812 = vmul.f32 %v695, %v771
        %v813 = vmul.f32 %v700, %v777
        %v814 = vmul.f32 %v705, %v783
        %v815 = vmul.f32 %v710, %v789
        %v816 = vmul.f32 %v715, %v795
        %v817 = vmul.f32 %v720, %v801
        %818 = vset.pattern.permute.xlu0 1
        %819 = vperm.xlu0 %818, %v378
        %v820 = vpop.permute.xlu0 %819
        %822 = vset.pattern.permute.xlu0 1
        %823 = vperm.xlu0 %822, %v381
        %v824 = vpop.permute.xlu0 %823
        %826 = vset.pattern.permute.xlu0 1
        %827 = vperm.xlu0 %826, %v384
        %v828 = vpop.permute.xlu0 %827
        %830 = vset.pattern.permute.xlu0 1
        %831 = vperm.xlu0 %830, %v387
        %v832 = vpop.permute.xlu0 %831
        %834 = vset.pattern.permute.xlu0 1
        %835 = vperm.xlu0 %834, %v390
        %v836 = vpop.permute.xlu0 %835
        %838 = vset.pattern.permute.xlu0 1
        %839 = vperm.xlu0 %838, %v393
        %v840 = vpop.permute.xlu0 %839
        %842 = vset.pattern.permute.xlu0 1
        %843 = vperm.xlu0 %842, %v396
        %v844 = vpop.permute.xlu0 %843
        %846 = vset.pattern.permute.xlu0 1
        %847 = vperm.xlu0 %846, %v399
        %v848 = vpop.permute.xlu0 %847
        %850 = vset.pattern.permute.xlu0 3
        %851 = vperm.xlu0 %850, %v378
        %v852 = vpop.permute.xlu0 %851
        %853 = vset.pattern.permute.xlu0 3
        %854 = vperm.xlu0 %853, %v381
        %v855 = vpop.permute.xlu0 %854
        %856 = vset.pattern.permute.xlu0 3
        %857 = vperm.xlu0 %856, %v384
        %v858 = vpop.permute.xlu0 %857
        %859 = vset.pattern.permute.xlu0 3
        %860 = vperm.xlu0 %859, %v387
        %v861 = vpop.permute.xlu0 %860
        %862 = vset.pattern.permute.xlu0 3
        %863 = vperm.xlu0 %862, %v390
        %v864 = vpop.permute.xlu0 %863
        %865 = vset.pattern.permute.xlu0 3
        %866 = vperm.xlu0 %865, %v393
        %v867 = vpop.permute.xlu0 %866
        %868 = vset.pattern.permute.xlu0 3
        %869 = vperm.xlu0 %868, %v396
        %v870 = vpop.permute.xlu0 %869
        %871 = vset.pattern.permute.xlu0 3
        %872 = vperm.xlu0 %871, %v399
        %v873 = vpop.permute.xlu0 %872
        %v874 = vperm.slane %v852, %v466
        %v875 = vperm.slane %v855, %v466
        %v876 = vperm.slane %v858, %v466
        %v877 = vperm.slane %v861, %v466
        %v878 = vperm.slane %v864, %v466
        %v879 = vperm.slane %v867, %v466
        %v880 = vperm.slane %v870, %v466
        %v881 = vperm.slane %v873, %v466
        %v882 = vsel %vm476, %v874, %v874
        %v883 = vsel %vm478, %v874, %v882
        %v884 = vsel %vm480, %v874, %v883
        %v885 = vsel %vm482, %v874, %v884
        %v886 = vsel %vm484, %v874, %v885
        %v887 = vsel %vm486, %v874, %v886
        %v888 = vsel %vm476, %v875, %v875
        %v889 = vsel %vm478, %v875, %v888
        %v890 = vsel %vm480, %v875, %v889
        %v891 = vsel %vm482, %v875, %v890
        %v892 = vsel %vm484, %v875, %v891
        %v893 = vsel %vm486, %v875, %v892
        %v894 = vsel %vm476, %v876, %v876
        %v895 = vsel %vm478, %v876, %v894
        %v896 = vsel %vm480, %v876, %v895
        %v897 = vsel %vm482, %v876, %v896
        %v898 = vsel %vm484, %v876, %v897
        %v899 = vsel %vm486, %v876, %v898
        %v900 = vsel %vm476, %v877, %v877
        %v901 = vsel %vm478, %v877, %v900
        %v902 = vsel %vm480, %v877, %v901
        %v903 = vsel %vm482, %v877, %v902
        %v904 = vsel %vm484, %v877, %v903
        %v905 = vsel %vm486, %v877, %v904
        %v906 = vsel %vm476, %v878, %v878
        %v907 = vsel %vm478, %v878, %v906
        %v908 = vsel %vm480, %v878, %v907
        %v909 = vsel %vm482, %v878, %v908
        %v910 = vsel %vm484, %v878, %v909
        %v911 = vsel %vm486, %v878, %v910
        %v912 = vsel %vm476, %v879, %v879
        %v913 = vsel %vm478, %v879, %v912
        %v914 = vsel %vm480, %v879, %v913
        %v915 = vsel %vm482, %v879, %v914
        %v916 = vsel %vm484, %v879, %v915
        %v917 = vsel %vm486, %v879, %v916
        %v918 = vsel %vm476, %v880, %v880
        %v919 = vsel %vm478, %v880, %v918
        %v920 = vsel %vm480, %v880, %v919
        %v921 = vsel %vm482, %v880, %v920
        %v922 = vsel %vm484, %v880, %v921
        %v923 = vsel %vm486, %v880, %v922
        %v924 = vsel %vm476, %v881, %v881
        %v925 = vsel %vm478, %v881, %v924
        %v926 = vsel %vm480, %v881, %v925
        %v927 = vsel %vm482, %v881, %v926
        %v928 = vsel %vm484, %v881, %v927
        %v929 = vsel %vm486, %v881, %v928
        %v938 = vmul.f32 %v820, %v887
        %v939 = vmul.f32 %v824, %v893
        %v940 = vmul.f32 %v828, %v899
        %v941 = vmul.f32 %v832, %v905
        %v942 = vmul.f32 %v836, %v911
        %v943 = vmul.f32 %v840, %v917
        %v944 = vmul.f32 %v844, %v923
        %v945 = vmul.f32 %v848, %v929
        %v946 = vadd.f32 %v810, %v938
        %v947 = vadd.f32 %v811, %v939
        %v948 = vadd.f32 %v812, %v940
        %v949 = vadd.f32 %v813, %v941
        %v950 = vadd.f32 %v814, %v942
        %v951 = vadd.f32 %v815, %v943
        %v952 = vadd.f32 %v816, %v944
        %v953 = vadd.f32 %v817, %v945
        %v954 = vlaneseq
        %v955 = vshrl.u32 %v954, 7
        %vm956 = vcmp.eq.s32.totalorder %v955, %v466
        %v957 = vsel %vm956, 1, 0
        %vm958 = vcmp.eq.s32.totalorder %v957, 1
        %v959 = vsel %vm958, -1e+30, %v946
        %v960 = vsel %vm958, -1e+30, %v947
        %v961 = vsel %vm958, -1e+30, %v948
        %v962 = vsel %vm958, -1e+30, %v949
        %v963 = vsel %vm958, -1e+30, %v950
        %v964 = vsel %vm958, -1e+30, %v951
        %v965 = vsel %vm958, -1e+30, %v952
        %v966 = vsel %vm958, -1e+30, %v953
        %vm967 = vcmask 64512
        %v968 = vsel %vm967, %v674, -inf
        %969 = vmax.xlane.f32.xlu0 %v968
        %v970 = vpop.xlane.xlu0 %969
        %v971 = vsel %vm967, %v675, -inf
        %972 = vmax.xlane.f32.xlu0 %v971
        %v973 = vpop.xlane.xlu0 %972
        %v974 = vsel %vm967, %v676, -inf
        %975 = vmax.xlane.f32.xlu0 %v974
        %v976 = vpop.xlane.xlu0 %975
        %v977 = vsel %vm967, %v677, -inf
        %978 = vmax.xlane.f32.xlu0 %v977
        %v979 = vpop.xlane.xlu0 %978
        %v980 = vsel %vm967, %v678, -inf
        %981 = vmax.xlane.f32.xlu0 %v980
        %v982 = vpop.xlane.xlu0 %981
        %v983 = vsel %vm967, %v679, -inf
        %984 = vmax.xlane.f32.xlu0 %v983
        %v985 = vpop.xlane.xlu0 %984
        %v986 = vsel %vm967, %v680, -inf
        %987 = vmax.xlane.f32.xlu0 %v986
        %v988 = vpop.xlane.xlu0 %987
        %v989 = vsel %vm967, %v681, -inf
        %990 = vmax.xlane.f32.xlu0 %v989
        %v991 = vpop.xlane.xlu0 %990
        %v992 = vsel %vm967, %v959, -inf
        %993 = vmax.xlane.f32.xlu0 %v992
        %v994 = vpop.xlane.xlu0 %993
        %v995 = vsel %vm967, %v960, -inf
        %996 = vmax.xlane.f32.xlu0 %v995
        %v997 = vpop.xlane.xlu0 %996
        %v998 = vsel %vm967, %v961, -inf
        %999 = vmax.xlane.f32.xlu0 %v998
        %v1000 = vpop.xlane.xlu0 %999
        %v1001 = vsel %vm967, %v962, -inf
        %1002 = vmax.xlane.f32.xlu0 %v1001
        %v1003 = vpop.xlane.xlu0 %1002
        %v1004 = vsel %vm967, %v963, -inf
        %1005 = vmax.xlane.f32.xlu0 %v1004
        %v1006 = vpop.xlane.xlu0 %1005
        %v1007 = vsel %vm967, %v964, -inf
        %1008 = vmax.xlane.f32.xlu0 %v1007
        %v1009 = vpop.xlane.xlu0 %1008
        %v1010 = vsel %vm967, %v965, -inf
        %1011 = vmax.xlane.f32.xlu0 %v1010
        %v1012 = vpop.xlane.xlu0 %1011
        %v1013 = vsel %vm967, %v966, -inf
        %1014 = vmax.xlane.f32.xlu0 %v1013
        %v1015 = vpop.xlane.xlu0 %1014
        %v1024 = vperm.slane %v994, %v466
        %v1025 = vperm.slane %v997, %v466
        %v1026 = vperm.slane %v1000, %v466
        %v1027 = vperm.slane %v1003, %v466
        %v1028 = vperm.slane %v1006, %v466
        %v1029 = vperm.slane %v1009, %v466
        %v1030 = vperm.slane %v1012, %v466
        %v1031 = vperm.slane %v1015, %v466
        %v1032 = vsel %vm475, %v1025, %v1024
        %v1033 = vsel %vm476, %v1026, %v1032
        %v1034 = vsel %vm478, %v1027, %v1033
        %v1035 = vsel %vm480, %v1028, %v1034
        %v1036 = vsel %vm482, %v1029, %v1035
        %v1037 = vsel %vm484, %v1030, %v1036
        %v1038 = vsel %vm486, %v1031, %v1037
        %1040 = vxpose.xlu0.b32.start [1/16] %v1038, 128
        %1041 = vxpose.xlu0.b32.cont [2/16] 0.0, 128
        %1042 = vxpose.xlu0.b32.cont [3/16] 0.0, 128
        %1043 = vxpose.xlu0.b32.cont [4/16] 0.0, 128
        %1044 = vxpose.xlu0.b32.cont [5/16] 0.0, 128
        %1045 = vxpose.xlu0.b32.cont [6/16] 0.0, 128
        %1046 = vxpose.xlu0.b32.cont [7/16] 0.0, 128
        %1047 = vxpose.xlu0.b32.cont [8/16] 0.0, 128
        %1048 = vxpose.xlu0.b32.cont [9/16] 0.0, 128
        %1049 = vxpose.xlu0.b32.cont [10/16] 0.0, 128
        %1050 = vxpose.xlu0.b32.cont [11/16] 0.0, 128
        %1051 = vxpose.xlu0.b32.cont [12/16] 0.0, 128
        %1052 = vxpose.xlu0.b32.cont [13/16] 0.0, 128
        %1053 = vxpose.xlu0.b32.cont [14/16] 0.0, 128
        %1054 = vxpose.xlu0.b32.cont [15/16] 0.0, 128
        %1055 = vxpose.xlu0.b32.end [16/16] 0.0, 128
        %v1056 = vpop.trf.xlu0
        %v1057 = vpop.trf.xlu0
        %v1058 = vpop.trf.xlu0
        %v1059 = vpop.trf.xlu0
        %v1060 = vpop.trf.xlu0
        %v1061 = vpop.trf.xlu0
        %v1062 = vpop.trf.xlu0
        %v1063 = vpop.trf.xlu0
        %v1064 = vpop.trf.xlu0
        %v1065 = vpop.trf.xlu0
        %v1066 = vpop.trf.xlu0
        %v1067 = vpop.trf.xlu0
        %v1068 = vpop.trf.xlu0
        %v1069 = vpop.trf.xlu0
        %v1070 = vpop.trf.xlu0
        %v1071 = vpop.trf.xlu0
        %v1073 = vperm.slane %v1056, 0
        %v1074 = vlaneseq
        %v1075 = vshrl.u32 %v1074, 7
        %1077 = vset.pattern.permute.xlu0 %v1075
        %1078 = vperm.xlu0 %1077, %v1073
        %v1079 = vpop.permute.xlu0 %1078
        %v1080 = vperm.slane %v1056, 1
        %v1081 = vlaneseq
        %v1082 = vshrl.u32 %v1081, 7
        %1084 = vset.pattern.permute.xlu0 %v1082
        %1085 = vperm.xlu0 %1084, %v1080
        %v1086 = vpop.permute.xlu0 %1085
        %v1087 = vperm.slane %v1056, 2
        %v1088 = vlaneseq
        %v1089 = vshrl.u32 %v1088, 7
        %1091 = vset.pattern.permute.xlu0 %v1089
        %1092 = vperm.xlu0 %1091, %v1087
        %v1093 = vpop.permute.xlu0 %1092
        %v1094 = vperm.slane %v1056, 3
        %v1095 = vlaneseq
        %v1096 = vshrl.u32 %v1095, 7
        %1098 = vset.pattern.permute.xlu0 %v1096
        %1099 = vperm.xlu0 %1098, %v1094
        %v1100 = vpop.permute.xlu0 %1099
        %v1101 = vperm.slane %v1056, 4
        %v1102 = vlaneseq
        %v1103 = vshrl.u32 %v1102, 7
        %1105 = vset.pattern.permute.xlu0 %v1103
        %1106 = vperm.xlu0 %1105, %v1101
        %v1107 = vpop.permute.xlu0 %1106
        %v1108 = vperm.slane %v1056, 5
        %v1109 = vlaneseq
        %v1110 = vshrl.u32 %v1109, 7
        %1112 = vset.pattern.permute.xlu0 %v1110
        %1113 = vperm.xlu0 %1112, %v1108
        %v1114 = vpop.permute.xlu0 %1113
        %v1115 = vperm.slane %v1056, 6
        %v1116 = vlaneseq
        %v1117 = vshrl.u32 %v1116, 7
        %1119 = vset.pattern.permute.xlu0 %v1117
        %1120 = vperm.xlu0 %1119, %v1115
        %v1121 = vpop.permute.xlu0 %1120
        %v1122 = vperm.slane %v1056, 7
        %v1123 = vlaneseq
        %v1124 = vshrl.u32 %v1123, 7
        %1126 = vset.pattern.permute.xlu0 %v1124
        %1127 = vperm.xlu0 %1126, %v1122
        %v1128 = vpop.permute.xlu0 %1127
        %v1137 = vmax.f32 %v970, %v1079
        %v1138 = vmax.f32 %v973, %v1086
        %v1139 = vmax.f32 %v976, %v1093
        %v1140 = vmax.f32 %v979, %v1100
        %v1141 = vmax.f32 %v982, %v1107
        %v1142 = vmax.f32 %v985, %v1114
        %v1143 = vmax.f32 %v988, %v1121
        %v1144 = vmax.f32 %v991, %v1128
        %1146 = vset.pattern.permute.xlu0 0
        %1147 = vperm.xlu0 %1146, %v1137
        %v1148 = vpop.permute.xlu0 %1147
        %1151 = vset.pattern.permute.xlu0 0
        %1152 = vperm.xlu0 %1151, %v1138
        %v1153 = vpop.permute.xlu0 %1152
        %1156 = vset.pattern.permute.xlu0 0
        %1157 = vperm.xlu0 %1156, %v1139
        %v1158 = vpop.permute.xlu0 %1157
        %1161 = vset.pattern.permute.xlu0 0
        %1162 = vperm.xlu0 %1161, %v1140
        %v1163 = vpop.permute.xlu0 %1162
        %1166 = vset.pattern.permute.xlu0 0
        %1167 = vperm.xlu0 %1166, %v1141
        %v1168 = vpop.permute.xlu0 %1167
        %1171 = vset.pattern.permute.xlu0 0
        %1172 = vperm.xlu0 %1171, %v1142
        %v1173 = vpop.permute.xlu0 %1172
        %1176 = vset.pattern.permute.xlu0 0
        %1177 = vperm.xlu0 %1176, %v1143
        %v1178 = vpop.permute.xlu0 %1177
        %1181 = vset.pattern.permute.xlu0 0
        %1182 = vperm.xlu0 %1181, %v1144
        %v1183 = vpop.permute.xlu0 %1182
        %v1185 = vsub.f32 %v674, %v1148
        %v1186 = vsub.f32 %v675, %v1153
        %v1187 = vsub.f32 %v676, %v1158
        %v1188 = vsub.f32 %v677, %v1163
        %v1189 = vsub.f32 %v678, %v1168
        %v1190 = vsub.f32 %v679, %v1173
        %v1191 = vsub.f32 %v680, %v1178
        %v1192 = vsub.f32 %v681, %v1183
        %v1193 = vmul.f32 %v1185, 1.442695
        %v1194 = vpow.pop %v1193
        %v1195 = vmul.f32 %v1186, 1.442695
        %v1196 = vpow.pop %v1195
        %v1197 = vmul.f32 %v1187, 1.442695
        %v1198 = vpow.pop %v1197
        %v1199 = vmul.f32 %v1188, 1.442695
        %v1200 = vpow.pop %v1199
        %v1201 = vmul.f32 %v1189, 1.442695
        %v1202 = vpow.pop %v1201
        %v1203 = vmul.f32 %v1190, 1.442695
        %v1204 = vpow.pop %v1203
        %v1205 = vmul.f32 %v1191, 1.442695
        %v1206 = vpow.pop %v1205
        %v1207 = vmul.f32 %v1192, 1.442695
        %v1208 = vpow.pop %v1207
        %v1209 = vperm.slane %v1148, %v466
        %v1210 = vperm.slane %v1153, %v466
        %v1211 = vperm.slane %v1158, %v466
        %v1212 = vperm.slane %v1163, %v466
        %v1213 = vperm.slane %v1168, %v466
        %v1214 = vperm.slane %v1173, %v466
        %v1215 = vperm.slane %v1178, %v466
        %v1216 = vperm.slane %v1183, %v466
        %v1217 = vsel %vm475, %v1210, %v1209
        %v1218 = vsel %vm476, %v1211, %v1217
        %v1219 = vsel %vm478, %v1212, %v1218
        %v1220 = vsel %vm480, %v1213, %v1219
        %v1221 = vsel %vm482, %v1214, %v1220
        %v1222 = vsel %vm484, %v1215, %v1221
        %v1223 = vsel %vm486, %v1216, %v1222
        %1225 = vxpose.xlu0.b32.start [1/16] %v1223, 128
        %1226 = vxpose.xlu0.b32.cont [2/16] 0.0, 128
        %1227 = vxpose.xlu0.b32.cont [3/16] 0.0, 128
        %1228 = vxpose.xlu0.b32.cont [4/16] 0.0, 128
        %1229 = vxpose.xlu0.b32.cont [5/16] 0.0, 128
        %1230 = vxpose.xlu0.b32.cont [6/16] 0.0, 128
        %1231 = vxpose.xlu0.b32.cont [7/16] 0.0, 128
        %1232 = vxpose.xlu0.b32.cont [8/16] 0.0, 128
        %1233 = vxpose.xlu0.b32.cont [9/16] 0.0, 128
        %1234 = vxpose.xlu0.b32.cont [10/16] 0.0, 128
        %1235 = vxpose.xlu0.b32.cont [11/16] 0.0, 128
        %1236 = vxpose.xlu0.b32.cont [12/16] 0.0, 128
        %1237 = vxpose.xlu0.b32.cont [13/16] 0.0, 128
        %1238 = vxpose.xlu0.b32.cont [14/16] 0.0, 128
        %1239 = vxpose.xlu0.b32.cont [15/16] 0.0, 128
        %1240 = vxpose.xlu0.b32.end [16/16] 0.0, 128
        %v1241 = vpop.trf.xlu0
        %v1242 = vpop.trf.xlu0
        %v1243 = vpop.trf.xlu0
        %v1244 = vpop.trf.xlu0
        %v1245 = vpop.trf.xlu0
        %v1246 = vpop.trf.xlu0
        %v1247 = vpop.trf.xlu0
        %v1248 = vpop.trf.xlu0
        %v1249 = vpop.trf.xlu0
        %v1250 = vpop.trf.xlu0
        %v1251 = vpop.trf.xlu0
        %v1252 = vpop.trf.xlu0
        %v1253 = vpop.trf.xlu0
        %v1254 = vpop.trf.xlu0
        %v1255 = vpop.trf.xlu0
        %v1256 = vpop.trf.xlu0
        %v1257 = vperm.slane %v1241, 0
        %v1258 = vlaneseq
        %v1259 = vshrl.u32 %v1258, 7
        %1261 = vset.pattern.permute.xlu0 %v1259
        %1262 = vperm.xlu0 %1261, %v1257
        %v1263 = vpop.permute.xlu0 %1262
        %v1264 = vperm.slane %v1241, 1
        %v1265 = vlaneseq
        %v1266 = vshrl.u32 %v1265, 7
        %1268 = vset.pattern.permute.xlu0 %v1266
        %1269 = vperm.xlu0 %1268, %v1264
        %v1270 = vpop.permute.xlu0 %1269
        %v1271 = vperm.slane %v1241, 2
        %v1272 = vlaneseq
        %v1273 = vshrl.u32 %v1272, 7
        %1275 = vset.pattern.permute.xlu0 %v1273
        %1276 = vperm.xlu0 %1275, %v1271
        %v1277 = vpop.permute.xlu0 %1276
        %v1278 = vperm.slane %v1241, 3
        %v1279 = vlaneseq
        %v1280 = vshrl.u32 %v1279, 7
        %1282 = vset.pattern.permute.xlu0 %v1280
        %1283 = vperm.xlu0 %1282, %v1278
        %v1284 = vpop.permute.xlu0 %1283
        %v1285 = vperm.slane %v1241, 4
        %v1286 = vlaneseq
        %v1287 = vshrl.u32 %v1286, 7
        %1289 = vset.pattern.permute.xlu0 %v1287
        %1290 = vperm.xlu0 %1289, %v1285
        %v1291 = vpop.permute.xlu0 %1290
        %v1292 = vperm.slane %v1241, 5
        %v1293 = vlaneseq
        %v1294 = vshrl.u32 %v1293, 7
        %1296 = vset.pattern.permute.xlu0 %v1294
        %1297 = vperm.xlu0 %1296, %v1292
        %v1298 = vpop.permute.xlu0 %1297
        %v1299 = vperm.slane %v1241, 6
        %v1300 = vlaneseq
        %v1301 = vshrl.u32 %v1300, 7
        %1303 = vset.pattern.permute.xlu0 %v1301
        %1304 = vperm.xlu0 %1303, %v1299
        %v1305 = vpop.permute.xlu0 %1304
        %v1306 = vperm.slane %v1241, 7
        %v1307 = vlaneseq
        %v1308 = vshrl.u32 %v1307, 7
        %1310 = vset.pattern.permute.xlu0 %v1308
        %1311 = vperm.xlu0 %1310, %v1306
        %v1312 = vpop.permute.xlu0 %1311
        %v1313 = vsub.f32 %v959, %v1263
        %v1314 = vsub.f32 %v960, %v1270
        %v1315 = vsub.f32 %v961, %v1277
        %v1316 = vsub.f32 %v962, %v1284
        %v1317 = vsub.f32 %v963, %v1291
        %v1318 = vsub.f32 %v964, %v1298
        %v1319 = vsub.f32 %v965, %v1305
        %v1320 = vsub.f32 %v966, %v1312
        %v1321 = vmul.f32 %v1313, 1.442695
        %v1322 = vpow.pop %v1321
        %v1323 = vmul.f32 %v1314, 1.442695
        %v1324 = vpow.pop %v1323
        %v1325 = vmul.f32 %v1315, 1.442695
        %v1326 = vpow.pop %v1325
        %v1327 = vmul.f32 %v1316, 1.442695
        %v1328 = vpow.pop %v1327
        %v1329 = vmul.f32 %v1317, 1.442695
        %v1330 = vpow.pop %v1329
        %v1331 = vmul.f32 %v1318, 1.442695
        %v1332 = vpow.pop %v1331
        %v1333 = vmul.f32 %v1319, 1.442695
        %v1334 = vpow.pop %v1333
        %v1335 = vmul.f32 %v1320, 1.442695
        %v1336 = vpow.pop %v1335
        %v1337 = vsel %vm967, %v1194, 0.0
        %1338 = vadd.xlane.f32.xlu0 %v1337
        %v1339 = vpop.xlane.xlu0 %1338
        %v1340 = vsel %vm967, %v1196, 0.0
        %1341 = vadd.xlane.f32.xlu0 %v1340
        %v1342 = vpop.xlane.xlu0 %1341
        %v1343 = vsel %vm967, %v1198, 0.0
        %1344 = vadd.xlane.f32.xlu0 %v1343
        %v1345 = vpop.xlane.xlu0 %1344
        %v1346 = vsel %vm967, %v1200, 0.0
        %1347 = vadd.xlane.f32.xlu0 %v1346
        %v1348 = vpop.xlane.xlu0 %1347
        %v1349 = vsel %vm967, %v1202, 0.0
        %1350 = vadd.xlane.f32.xlu0 %v1349
        %v1351 = vpop.xlane.xlu0 %1350
        %v1352 = vsel %vm967, %v1204, 0.0
        %1353 = vadd.xlane.f32.xlu0 %v1352
        %v1354 = vpop.xlane.xlu0 %1353
        %v1355 = vsel %vm967, %v1206, 0.0
        %1356 = vadd.xlane.f32.xlu0 %v1355
        %v1357 = vpop.xlane.xlu0 %1356
        %v1358 = vsel %vm967, %v1208, 0.0
        %1359 = vadd.xlane.f32.xlu0 %v1358
        %v1360 = vpop.xlane.xlu0 %1359
        %v1361 = vsel %vm967, %v1322, 0.0
        %1362 = vadd.xlane.f32.xlu0 %v1361
        %v1363 = vpop.xlane.xlu0 %1362
        %v1364 = vsel %vm967, %v1324, 0.0
        %1365 = vadd.xlane.f32.xlu0 %v1364
        %v1366 = vpop.xlane.xlu0 %1365
        %v1367 = vsel %vm967, %v1326, 0.0
        %1368 = vadd.xlane.f32.xlu0 %v1367
        %v1369 = vpop.xlane.xlu0 %1368
        %v1370 = vsel %vm967, %v1328, 0.0
        %1371 = vadd.xlane.f32.xlu0 %v1370
        %v1372 = vpop.xlane.xlu0 %1371
        %v1373 = vsel %vm967, %v1330, 0.0
        %1374 = vadd.xlane.f32.xlu0 %v1373
        %v1375 = vpop.xlane.xlu0 %1374
        %v1376 = vsel %vm967, %v1332, 0.0
        %1377 = vadd.xlane.f32.xlu0 %v1376
        %v1378 = vpop.xlane.xlu0 %1377
        %v1379 = vsel %vm967, %v1334, 0.0
        %1380 = vadd.xlane.f32.xlu0 %v1379
        %v1381 = vpop.xlane.xlu0 %1380
        %v1382 = vsel %vm967, %v1336, 0.0
        %1383 = vadd.xlane.f32.xlu0 %v1382
        %v1384 = vpop.xlane.xlu0 %1383
        %v1393 = vperm.slane %v1363, %v466
        %v1394 = vperm.slane %v1366, %v466
        %v1395 = vperm.slane %v1369, %v466
        %v1396 = vperm.slane %v1372, %v466
        %v1397 = vperm.slane %v1375, %v466
        %v1398 = vperm.slane %v1378, %v466
        %v1399 = vperm.slane %v1381, %v466
        %v1400 = vperm.slane %v1384, %v466
        %v1401 = vsel %vm475, %v1394, %v1393
        %v1402 = vsel %vm476, %v1395, %v1401
        %v1403 = vsel %vm478, %v1396, %v1402
        %v1404 = vsel %vm480, %v1397, %v1403
        %v1405 = vsel %vm482, %v1398, %v1404
        %v1406 = vsel %vm484, %v1399, %v1405
        %v1407 = vsel %vm486, %v1400, %v1406
        %1409 = vxpose.xlu0.b32.start [1/16] %v1407, 128
        %1410 = vxpose.xlu0.b32.cont [2/16] 0.0, 128
        %1411 = vxpose.xlu0.b32.cont [3/16] 0.0, 128
        %1412 = vxpose.xlu0.b32.cont [4/16] 0.0, 128
        %1413 = vxpose.xlu0.b32.cont [5/16] 0.0, 128
        %1414 = vxpose.xlu0.b32.cont [6/16] 0.0, 128
        %1415 = vxpose.xlu0.b32.cont [7/16] 0.0, 128
        %1416 = vxpose.xlu0.b32.cont [8/16] 0.0, 128
        %1417 = vxpose.xlu0.b32.cont [9/16] 0.0, 128
        %1418 = vxpose.xlu0.b32.cont [10/16] 0.0, 128
        %1419 = vxpose.xlu0.b32.cont [11/16] 0.0, 128
        %1420 = vxpose.xlu0.b32.cont [12/16] 0.0, 128
        %1421 = vxpose.xlu0.b32.cont [13/16] 0.0, 128
        %1422 = vxpose.xlu0.b32.cont [14/16] 0.0, 128
        %1423 = vxpose.xlu0.b32.cont [15/16] 0.0, 128
        %1424 = vxpose.xlu0.b32.end [16/16] 0.0, 128
        %v1425 = vpop.trf.xlu0
        %v1426 = vpop.trf.xlu0
        %v1427 = vpop.trf.xlu0
        %v1428 = vpop.trf.xlu0
        %v1429 = vpop.trf.xlu0
        %v1430 = vpop.trf.xlu0
        %v1431 = vpop.trf.xlu0
        %v1432 = vpop.trf.xlu0
        %v1433 = vpop.trf.xlu0
        %v1434 = vpop.trf.xlu0
        %v1435 = vpop.trf.xlu0
        %v1436 = vpop.trf.xlu0
        %v1437 = vpop.trf.xlu0
        %v1438 = vpop.trf.xlu0
        %v1439 = vpop.trf.xlu0
        %v1440 = vpop.trf.xlu0
        %v1442 = vperm.slane %v1425, 0
        %v1443 = vlaneseq
        %v1444 = vshrl.u32 %v1443, 7
        %1446 = vset.pattern.permute.xlu0 %v1444
        %1447 = vperm.xlu0 %1446, %v1442
        %v1448 = vpop.permute.xlu0 %1447
        %v1449 = vperm.slane %v1425, 1
        %v1450 = vlaneseq
        %v1451 = vshrl.u32 %v1450, 7
        %1453 = vset.pattern.permute.xlu0 %v1451
        %1454 = vperm.xlu0 %1453, %v1449
        %v1455 = vpop.permute.xlu0 %1454
        %v1456 = vperm.slane %v1425, 2
        %v1457 = vlaneseq
        %v1458 = vshrl.u32 %v1457, 7
        %1460 = vset.pattern.permute.xlu0 %v1458
        %1461 = vperm.xlu0 %1460, %v1456
        %v1462 = vpop.permute.xlu0 %1461
        %v1463 = vperm.slane %v1425, 3
        %v1464 = vlaneseq
        %v1465 = vshrl.u32 %v1464, 7
        %1467 = vset.pattern.permute.xlu0 %v1465
        %1468 = vperm.xlu0 %1467, %v1463
        %v1469 = vpop.permute.xlu0 %1468
        %v1470 = vperm.slane %v1425, 4
        %v1471 = vlaneseq
        %v1472 = vshrl.u32 %v1471, 7
        %1474 = vset.pattern.permute.xlu0 %v1472
        %1475 = vperm.xlu0 %1474, %v1470
        %v1476 = vpop.permute.xlu0 %1475
        %v1477 = vperm.slane %v1425, 5
        %v1478 = vlaneseq
        %v1479 = vshrl.u32 %v1478, 7
        %1481 = vset.pattern.permute.xlu0 %v1479
        %1482 = vperm.xlu0 %1481, %v1477
        %v1483 = vpop.permute.xlu0 %1482
        %v1484 = vperm.slane %v1425, 6
        %v1485 = vlaneseq
        %v1486 = vshrl.u32 %v1485, 7
        %1488 = vset.pattern.permute.xlu0 %v1486
        %1489 = vperm.xlu0 %1488, %v1484
        %v1490 = vpop.permute.xlu0 %1489
        %v1491 = vperm.slane %v1425, 7
        %v1492 = vlaneseq
        %v1493 = vshrl.u32 %v1492, 7
        %1495 = vset.pattern.permute.xlu0 %v1493
        %1496 = vperm.xlu0 %1495, %v1491
        %v1497 = vpop.permute.xlu0 %1496
        %v1506 = vadd.f32 %v1339, %v1448
        %v1507 = vadd.f32 %v1342, %v1455
        %v1508 = vadd.f32 %v1345, %v1462
        %v1509 = vadd.f32 %v1348, %v1469
        %v1510 = vadd.f32 %v1351, %v1476
        %v1511 = vadd.f32 %v1354, %v1483
        %v1512 = vadd.f32 %v1357, %v1490
        %v1513 = vadd.f32 %v1360, %v1497
        %v1514 = vrcp.pop %v1506
        %v1515 = vrcp.pop %v1507
        %v1516 = vrcp.pop %v1508
        %v1517 = vrcp.pop %v1509
        %v1518 = vrcp.pop %v1510
        %v1519 = vrcp.pop %v1511
        %v1520 = vrcp.pop %v1512
        %v1521 = vrcp.pop %v1513
        %v1522 = vmul.f32 %v1506, %v1514
        %v1523 = vmul.f32 %v1507, %v1515
        %v1524 = vmul.f32 %v1508, %v1516
        %v1525 = vmul.f32 %v1509, %v1517
        %v1526 = vmul.f32 %v1510, %v1518
        %v1527 = vmul.f32 %v1511, %v1519
        %v1528 = vmul.f32 %v1512, %v1520
        %v1529 = vmul.f32 %v1513, %v1521
        %v1530 = vsub.f32 2.0, %v1522
        %v1531 = vsub.f32 2.0, %v1523
        %v1532 = vsub.f32 2.0, %v1524
        %v1533 = vsub.f32 2.0, %v1525
        %v1534 = vsub.f32 2.0, %v1526
        %v1535 = vsub.f32 2.0, %v1527
        %v1536 = vsub.f32 2.0, %v1528
        %v1537 = vsub.f32 2.0, %v1529
        %v1538 = vmul.f32 %v1514, %v1530
        %v1539 = vmul.f32 %v1515, %v1531
        %v1540 = vmul.f32 %v1516, %v1532
        %v1541 = vmul.f32 %v1517, %v1533
        %v1542 = vmul.f32 %v1518, %v1534
        %v1543 = vmul.f32 %v1519, %v1535
        %v1544 = vmul.f32 %v1520, %v1536
        %v1545 = vmul.f32 %v1521, %v1537
        %1547 = vset.pattern.permute.xlu0 0
        %1548 = vperm.xlu0 %1547, %v1538
        %v1549 = vpop.permute.xlu0 %1548
        %1552 = vset.pattern.permute.xlu0 0
        %1553 = vperm.xlu0 %1552, %v1539
        %v1554 = vpop.permute.xlu0 %1553
        %1557 = vset.pattern.permute.xlu0 0
        %1558 = vperm.xlu0 %1557, %v1540
        %v1559 = vpop.permute.xlu0 %1558
        %1562 = vset.pattern.permute.xlu0 0
        %1563 = vperm.xlu0 %1562, %v1541
        %v1564 = vpop.permute.xlu0 %1563
        %1567 = vset.pattern.permute.xlu0 0
        %1568 = vperm.xlu0 %1567, %v1542
        %v1569 = vpop.permute.xlu0 %1568
        %1572 = vset.pattern.permute.xlu0 0
        %1573 = vperm.xlu0 %1572, %v1543
        %v1574 = vpop.permute.xlu0 %1573
        %1577 = vset.pattern.permute.xlu0 0
        %1578 = vperm.xlu0 %1577, %v1544
        %v1579 = vpop.permute.xlu0 %1578
        %1582 = vset.pattern.permute.xlu0 0
        %1583 = vperm.xlu0 %1582, %v1545
        %v1584 = vpop.permute.xlu0 %1583
        %v1586 = vmul.f32 %v1194, %v1549
        %v1587 = vmul.f32 %v1196, %v1554
        %v1588 = vmul.f32 %v1198, %v1559
        %v1589 = vmul.f32 %v1200, %v1564
        %v1590 = vmul.f32 %v1202, %v1569
        %v1591 = vmul.f32 %v1204, %v1574
        %v1592 = vmul.f32 %v1206, %v1579
        %v1593 = vmul.f32 %v1208, %v1584
        %v1594 = vperm.slane %v1549, %v466
        %v1595 = vperm.slane %v1554, %v466
        %v1596 = vperm.slane %v1559, %v466
        %v1597 = vperm.slane %v1564, %v466
        %v1598 = vperm.slane %v1569, %v466
        %v1599 = vperm.slane %v1574, %v466
        %v1600 = vperm.slane %v1579, %v466
        %v1601 = vperm.slane %v1584, %v466
        %v1602 = vsel %vm475, %v1595, %v1594
        %v1603 = vsel %vm476, %v1596, %v1602
        %v1604 = vsel %vm478, %v1597, %v1603
        %v1605 = vsel %vm480, %v1598, %v1604
        %v1606 = vsel %vm482, %v1599, %v1605
        %v1607 = vsel %vm484, %v1600, %v1606
        %v1608 = vsel %vm486, %v1601, %v1607
        %1610 = vxpose.xlu0.b32.start [1/16] %v1608, 128
        %1611 = vxpose.xlu0.b32.cont [2/16] 0.0, 128
        %1612 = vxpose.xlu0.b32.cont [3/16] 0.0, 128
        %1613 = vxpose.xlu0.b32.cont [4/16] 0.0, 128
        %1614 = vxpose.xlu0.b32.cont [5/16] 0.0, 128
        %1615 = vxpose.xlu0.b32.cont [6/16] 0.0, 128
        %1616 = vxpose.xlu0.b32.cont [7/16] 0.0, 128
        %1617 = vxpose.xlu0.b32.cont [8/16] 0.0, 128
        %1618 = vxpose.xlu0.b32.cont [9/16] 0.0, 128
        %1619 = vxpose.xlu0.b32.cont [10/16] 0.0, 128
        %1620 = vxpose.xlu0.b32.cont [11/16] 0.0, 128
        %1621 = vxpose.xlu0.b32.cont [12/16] 0.0, 128
        %1622 = vxpose.xlu0.b32.cont [13/16] 0.0, 128
        %1623 = vxpose.xlu0.b32.cont [14/16] 0.0, 128
        %1624 = vxpose.xlu0.b32.cont [15/16] 0.0, 128
        %1625 = vxpose.xlu0.b32.end [16/16] 0.0, 128
        %v1626 = vpop.trf.xlu0
        %v1627 = vpop.trf.xlu0
        %v1628 = vpop.trf.xlu0
        %v1629 = vpop.trf.xlu0
        %v1630 = vpop.trf.xlu0
        %v1631 = vpop.trf.xlu0
        %v1632 = vpop.trf.xlu0
        %v1633 = vpop.trf.xlu0
        %v1634 = vpop.trf.xlu0
        %v1635 = vpop.trf.xlu0
        %v1636 = vpop.trf.xlu0
        %v1637 = vpop.trf.xlu0
        %v1638 = vpop.trf.xlu0
        %v1639 = vpop.trf.xlu0
        %v1640 = vpop.trf.xlu0
        %v1641 = vpop.trf.xlu0
        %v1642 = vperm.slane %v1626, 0
        %v1643 = vlaneseq
        %v1644 = vshrl.u32 %v1643, 7
        %1646 = vset.pattern.permute.xlu0 %v1644
        %1647 = vperm.xlu0 %1646, %v1642
        %v1648 = vpop.permute.xlu0 %1647
        %v1649 = vperm.slane %v1626, 1
        %v1650 = vlaneseq
        %v1651 = vshrl.u32 %v1650, 7
        %1653 = vset.pattern.permute.xlu0 %v1651
        %1654 = vperm.xlu0 %1653, %v1649
        %v1655 = vpop.permute.xlu0 %1654
        %v1656 = vperm.slane %v1626, 2
        %v1657 = vlaneseq
        %v1658 = vshrl.u32 %v1657, 7
        %1660 = vset.pattern.permute.xlu0 %v1658
        %1661 = vperm.xlu0 %1660, %v1656
        %v1662 = vpop.permute.xlu0 %1661
        %v1663 = vperm.slane %v1626, 3
        %v1664 = vlaneseq
        %v1665 = vshrl.u32 %v1664, 7
        %1667 = vset.pattern.permute.xlu0 %v1665
        %1668 = vperm.xlu0 %1667, %v1663
        %v1669 = vpop.permute.xlu0 %1668
        %v1670 = vperm.slane %v1626, 4
        %v1671 = vlaneseq
        %v1672 = vshrl.u32 %v1671, 7
        %1674 = vset.pattern.permute.xlu0 %v1672
        %1675 = vperm.xlu0 %1674, %v1670
        %v1676 = vpop.permute.xlu0 %1675
        %v1677 = vperm.slane %v1626, 5
        %v1678 = vlaneseq
        %v1679 = vshrl.u32 %v1678, 7
        %1681 = vset.pattern.permute.xlu0 %v1679
        %1682 = vperm.xlu0 %1681, %v1677
        %v1683 = vpop.permute.xlu0 %1682
        %v1684 = vperm.slane %v1626, 6
        %v1685 = vlaneseq
        %v1686 = vshrl.u32 %v1685, 7
        %1688 = vset.pattern.permute.xlu0 %v1686
        %1689 = vperm.xlu0 %1688, %v1684
        %v1690 = vpop.permute.xlu0 %1689
        %v1691 = vperm.slane %v1626, 7
        %v1692 = vlaneseq
        %v1693 = vshrl.u32 %v1692, 7
        %1695 = vset.pattern.permute.xlu0 %v1693
        %1696 = vperm.xlu0 %1695, %v1691
        %v1697 = vpop.permute.xlu0 %1696
        %v1698 = vmul.f32 %v1322, %v1648
        %v1699 = vmul.f32 %v1324, %v1655
        %v1700 = vmul.f32 %v1326, %v1662
        %v1701 = vmul.f32 %v1328, %v1669
        %v1702 = vmul.f32 %v1330, %v1676
        %v1703 = vmul.f32 %v1332, %v1683
        %v1704 = vmul.f32 %v1334, %v1690
        %v1705 = vmul.f32 %v1336, %v1697
        %1706 = vrot.lane.b32.xlu0 %v313, 124
        %v1707 = vpop.permute.xlu0 %1706
        %v1710 = vsel %vm967, %v1586, 0
        %1712 = vmatpush.msra.mxu0 0.0
        %1713 = vmatpush.msra.mxu0 0.0
        %1714 = vmatpush.msra.mxu0 0.0
        %1715 = vmatpush.msra.mxu0 0.0
        %1716 = vmatpush.msra.mxu0 0.0
        %1717 = vmatpush.msra.mxu0 0.0
        %1718 = vmatpush.msra.mxu0 0.0
        %1719 = vmatpush.msra.mxu0 0.0
        %1720 = vmatpush.msra.mxu0 0.0
        %1721 = vmatpush.msra.mxu0 0.0
        %1722 = vmatpush.msra.mxu0 0.0
        %1723 = vmatpush.msra.mxu0 0.0
        %1724 = vmatpush.msra.mxu0 0.0
        %1725 = vmatpush.msra.mxu0 0.0
        %1726 = vmatpush.msra.mxu0 0.0
        %1727 = vmatpush.msra.mxu0 %v1707
        %1728 = vmatmul.f32.gmra.mxu0 %v1710
        %v1729 = vpop.f32.mrf.mxu0
        %v1730 = vadd.f32 0.0, %v1729
        %1731 = vdwg.mxu0
        %1732 = vrot.lane.b32.xlu0 %v316, 124
        %v1733 = vpop.permute.xlu0 %1732
        %v1736 = vsel %vm967, %v1587, 0
        %1738 = vmatpush.msra.mxu0 0.0
        %1739 = vmatpush.msra.mxu0 0.0
        %1740 = vmatpush.msra.mxu0 0.0
        %1741 = vmatpush.msra.mxu0 0.0
        %1742 = vmatpush.msra.mxu0 0.0
        %1743 = vmatpush.msra.mxu0 0.0
        %1744 = vmatpush.msra.mxu0 0.0
        %1745 = vmatpush.msra.mxu0 0.0
        %1746 = vmatpush.msra.mxu0 0.0
        %1747 = vmatpush.msra.mxu0 0.0
        %1748 = vmatpush.msra.mxu0 0.0
        %1749 = vmatpush.msra.mxu0 0.0
        %1750 = vmatpush.msra.mxu0 0.0
        %1751 = vmatpush.msra.mxu0 0.0
        %1752 = vmatpush.msra.mxu0 0.0
        %1753 = vmatpush.msra.mxu0 %v1733
        %1754 = vmatmul.f32.gmra.mxu0 %v1736
        %v1755 = vpop.f32.mrf.mxu0
        %v1756 = vadd.f32 0.0, %v1755
        %1757 = vdwg.mxu0
        %1758 = vrot.lane.b32.xlu0 %v319, 124
        %v1759 = vpop.permute.xlu0 %1758
        %v1762 = vsel %vm967, %v1588, 0
        %1764 = vmatpush.msra.mxu0 0.0
        %1765 = vmatpush.msra.mxu0 0.0
        %1766 = vmatpush.msra.mxu0 0.0
        %1767 = vmatpush.msra.mxu0 0.0
        %1768 = vmatpush.msra.mxu0 0.0
        %1769 = vmatpush.msra.mxu0 0.0
        %1770 = vmatpush.msra.mxu0 0.0
        %1771 = vmatpush.msra.mxu0 0.0
        %1772 = vmatpush.msra.mxu0 0.0
        %1773 = vmatpush.msra.mxu0 0.0
        %1774 = vmatpush.msra.mxu0 0.0
        %1775 = vmatpush.msra.mxu0 0.0
        %1776 = vmatpush.msra.mxu0 0.0
        %1777 = vmatpush.msra.mxu0 0.0
        %1778 = vmatpush.msra.mxu0 0.0
        %1779 = vmatpush.msra.mxu0 %v1759
        %1780 = vmatmul.f32.gmra.mxu0 %v1762
        %v1781 = vpop.f32.mrf.mxu0
        %v1782 = vadd.f32 0.0, %v1781
        %1783 = vdwg.mxu0
        %1784 = vrot.lane.b32.xlu0 %v322, 124
        %v1785 = vpop.permute.xlu0 %1784
        %v1788 = vsel %vm967, %v1589, 0
        %1790 = vmatpush.msra.mxu0 0.0
        %1791 = vmatpush.msra.mxu0 0.0
        %1792 = vmatpush.msra.mxu0 0.0
        %1793 = vmatpush.msra.mxu0 0.0
        %1794 = vmatpush.msra.mxu0 0.0
        %1795 = vmatpush.msra.mxu0 0.0
        %1796 = vmatpush.msra.mxu0 0.0
        %1797 = vmatpush.msra.mxu0 0.0
        %1798 = vmatpush.msra.mxu0 0.0
        %1799 = vmatpush.msra.mxu0 0.0
        %1800 = vmatpush.msra.mxu0 0.0
        %1801 = vmatpush.msra.mxu0 0.0
        %1802 = vmatpush.msra.mxu0 0.0
        %1803 = vmatpush.msra.mxu0 0.0
        %1804 = vmatpush.msra.mxu0 0.0
        %1805 = vmatpush.msra.mxu0 %v1785
        %1806 = vmatmul.f32.gmra.mxu0 %v1788
        %v1807 = vpop.f32.mrf.mxu0
        %v1808 = vadd.f32 0.0, %v1807
        %1809 = vdwg.mxu0
        %1810 = vrot.lane.b32.xlu0 %v325, 124
        %v1811 = vpop.permute.xlu0 %1810
        %v1814 = vsel %vm967, %v1590, 0
        %1816 = vmatpush.msra.mxu0 0.0
        %1817 = vmatpush.msra.mxu0 0.0
        %1818 = vmatpush.msra.mxu0 0.0
        %1819 = vmatpush.msra.mxu0 0.0
        %1820 = vmatpush.msra.mxu0 0.0
        %1821 = vmatpush.msra.mxu0 0.0
        %1822 = vmatpush.msra.mxu0 0.0
        %1823 = vmatpush.msra.mxu0 0.0
        %1824 = vmatpush.msra.mxu0 0.0
        %1825 = vmatpush.msra.mxu0 0.0
        %1826 = vmatpush.msra.mxu0 0.0
        %1827 = vmatpush.msra.mxu0 0.0
        %1828 = vmatpush.msra.mxu0 0.0
        %1829 = vmatpush.msra.mxu0 0.0
        %1830 = vmatpush.msra.mxu0 0.0
        %1831 = vmatpush.msra.mxu0 %v1811
        %1832 = vmatmul.f32.gmra.mxu0 %v1814
        %v1833 = vpop.f32.mrf.mxu0
        %v1834 = vadd.f32 0.0, %v1833
        %1835 = vdwg.mxu0
        %1836 = vrot.lane.b32.xlu0 %v328, 124
        %v1837 = vpop.permute.xlu0 %1836
        %v1840 = vsel %vm967, %v1591, 0
        %1842 = vmatpush.msra.mxu0 0.0
        %1843 = vmatpush.msra.mxu0 0.0
        %1844 = vmatpush.msra.mxu0 0.0
        %1845 = vmatpush.msra.mxu0 0.0
        %1846 = vmatpush.msra.mxu0 0.0
        %1847 = vmatpush.msra.mxu0 0.0
        %1848 = vmatpush.msra.mxu0 0.0
        %1849 = vmatpush.msra.mxu0 0.0
        %1850 = vmatpush.msra.mxu0 0.0
        %1851 = vmatpush.msra.mxu0 0.0
        %1852 = vmatpush.msra.mxu0 0.0
        %1853 = vmatpush.msra.mxu0 0.0
        %1854 = vmatpush.msra.mxu0 0.0
        %1855 = vmatpush.msra.mxu0 0.0
        %1856 = vmatpush.msra.mxu0 0.0
        %1857 = vmatpush.msra.mxu0 %v1837
        %1858 = vmatmul.f32.gmra.mxu0 %v1840
        %v1859 = vpop.f32.mrf.mxu0
        %v1860 = vadd.f32 0.0, %v1859
        %1861 = vdwg.mxu0
        %1862 = vrot.lane.b32.xlu0 %v331, 124
        %v1863 = vpop.permute.xlu0 %1862
        %v1866 = vsel %vm967, %v1592, 0
        %1868 = vmatpush.msra.mxu0 0.0
        %1869 = vmatpush.msra.mxu0 0.0
        %1870 = vmatpush.msra.mxu0 0.0
        %1871 = vmatpush.msra.mxu0 0.0
        %1872 = vmatpush.msra.mxu0 0.0
        %1873 = vmatpush.msra.mxu0 0.0
        %1874 = vmatpush.msra.mxu0 0.0
        %1875 = vmatpush.msra.mxu0 0.0
        %1876 = vmatpush.msra.mxu0 0.0
        %1877 = vmatpush.msra.mxu0 0.0
        %1878 = vmatpush.msra.mxu0 0.0
        %1879 = vmatpush.msra.mxu0 0.0
        %1880 = vmatpush.msra.mxu0 0.0
        %1881 = vmatpush.msra.mxu0 0.0
        %1882 = vmatpush.msra.mxu0 0.0
        %1883 = vmatpush.msra.mxu0 %v1863
        %1884 = vmatmul.f32.gmra.mxu0 %v1866
        %v1885 = vpop.f32.mrf.mxu0
        %v1886 = vadd.f32 0.0, %v1885
        %1887 = vdwg.mxu0
        %1888 = vrot.lane.b32.xlu0 %v334, 124
        %v1889 = vpop.permute.xlu0 %1888
        %v1892 = vsel %vm967, %v1593, 0
        %1894 = vmatpush.msra.mxu0 0.0
        %1895 = vmatpush.msra.mxu0 0.0
        %1896 = vmatpush.msra.mxu0 0.0
        %1897 = vmatpush.msra.mxu0 0.0
        %1898 = vmatpush.msra.mxu0 0.0
        %1899 = vmatpush.msra.mxu0 0.0
        %1900 = vmatpush.msra.mxu0 0.0
        %1901 = vmatpush.msra.mxu0 0.0
        %1902 = vmatpush.msra.mxu0 0.0
        %1903 = vmatpush.msra.mxu0 0.0
        %1904 = vmatpush.msra.mxu0 0.0
        %1905 = vmatpush.msra.mxu0 0.0
        %1906 = vmatpush.msra.mxu0 0.0
        %1907 = vmatpush.msra.mxu0 0.0
        %1908 = vmatpush.msra.mxu0 0.0
        %1909 = vmatpush.msra.mxu0 %v1889
        %1910 = vmatmul.f32.gmra.mxu0 %v1892
        %v1911 = vpop.f32.mrf.mxu0
        %v1912 = vadd.f32 0.0, %v1911
        %1913 = vdwg.mxu0
        %1914 = vrot.lane.b32.xlu0 %v378, 124
        %v1915 = vpop.permute.xlu0 %1914
        %v1918 = vsel %vm967, %v1698, 0
        %1920 = vmatpush.msra.mxu0 0.0
        %1921 = vmatpush.msra.mxu0 0.0
        %1922 = vmatpush.msra.mxu0 0.0
        %1923 = vmatpush.msra.mxu0 0.0
        %1924 = vmatpush.msra.mxu0 0.0
        %1925 = vmatpush.msra.mxu0 0.0
        %1926 = vmatpush.msra.mxu0 0.0
        %1927 = vmatpush.msra.mxu0 0.0
        %1928 = vmatpush.msra.mxu0 0.0
        %1929 = vmatpush.msra.mxu0 0.0
        %1930 = vmatpush.msra.mxu0 0.0
        %1931 = vmatpush.msra.mxu0 0.0
        %1932 = vmatpush.msra.mxu0 0.0
        %1933 = vmatpush.msra.mxu0 0.0
        %1934 = vmatpush.msra.mxu0 0.0
        %1935 = vmatpush.msra.mxu0 %v1915
        %1936 = vmatmul.f32.gmra.mxu0 %v1918
        %v1937 = vpop.f32.mrf.mxu0
        %v1938 = vadd.f32 0.0, %v1937
        %1939 = vdwg.mxu0
        %1940 = vrot.lane.b32.xlu0 %v381, 124
        %v1941 = vpop.permute.xlu0 %1940
        %v1944 = vsel %vm967, %v1699, 0
        %1946 = vmatpush.msra.mxu0 0.0
        %1947 = vmatpush.msra.mxu0 0.0
        %1948 = vmatpush.msra.mxu0 0.0
        %1949 = vmatpush.msra.mxu0 0.0
        %1950 = vmatpush.msra.mxu0 0.0
        %1951 = vmatpush.msra.mxu0 0.0
        %1952 = vmatpush.msra.mxu0 0.0
        %1953 = vmatpush.msra.mxu0 0.0
        %1954 = vmatpush.msra.mxu0 0.0
        %1955 = vmatpush.msra.mxu0 0.0
        %1956 = vmatpush.msra.mxu0 0.0
        %1957 = vmatpush.msra.mxu0 0.0
        %1958 = vmatpush.msra.mxu0 0.0
        %1959 = vmatpush.msra.mxu0 0.0
        %1960 = vmatpush.msra.mxu0 0.0
        %1961 = vmatpush.msra.mxu0 %v1941
        %1962 = vmatmul.f32.gmra.mxu0 %v1944
        %v1963 = vpop.f32.mrf.mxu0
        %v1964 = vadd.f32 0.0, %v1963
        %1965 = vdwg.mxu0
        %1966 = vrot.lane.b32.xlu0 %v384, 124
        %v1967 = vpop.permute.xlu0 %1966
        %v1970 = vsel %vm967, %v1700, 0
        %1972 = vmatpush.msra.mxu0 0.0
        %1973 = vmatpush.msra.mxu0 0.0
        %1974 = vmatpush.msra.mxu0 0.0
        %1975 = vmatpush.msra.mxu0 0.0
        %1976 = vmatpush.msra.mxu0 0.0
        %1977 = vmatpush.msra.mxu0 0.0
        %1978 = vmatpush.msra.mxu0 0.0
        %1979 = vmatpush.msra.mxu0 0.0
        %1980 = vmatpush.msra.mxu0 0.0
        %1981 = vmatpush.msra.mxu0 0.0
        %1982 = vmatpush.msra.mxu0 0.0
        %1983 = vmatpush.msra.mxu0 0.0
        %1984 = vmatpush.msra.mxu0 0.0
        %1985 = vmatpush.msra.mxu0 0.0
        %1986 = vmatpush.msra.mxu0 0.0
        %1987 = vmatpush.msra.mxu0 %v1967
        %1988 = vmatmul.f32.gmra.mxu0 %v1970
        %v1989 = vpop.f32.mrf.mxu0
        %v1990 = vadd.f32 0.0, %v1989
        %1991 = vdwg.mxu0
        %1992 = vrot.lane.b32.xlu0 %v387, 124
        %v1993 = vpop.permute.xlu0 %1992
        %v1996 = vsel %vm967, %v1701, 0
        %1998 = vmatpush.msra.mxu0 0.0
        %1999 = vmatpush.msra.mxu0 0.0
        %2000 = vmatpush.msra.mxu0 0.0
        %2001 = vmatpush.msra.mxu0 0.0
        %2002 = vmatpush.msra.mxu0 0.0
        %2003 = vmatpush.msra.mxu0 0.0
        %2004 = vmatpush.msra.mxu0 0.0
        %2005 = vmatpush.msra.mxu0 0.0
        %2006 = vmatpush.msra.mxu0 0.0
        %2007 = vmatpush.msra.mxu0 0.0
        %2008 = vmatpush.msra.mxu0 0.0
        %2009 = vmatpush.msra.mxu0 0.0
        %2010 = vmatpush.msra.mxu0 0.0
        %2011 = vmatpush.msra.mxu0 0.0
        %2012 = vmatpush.msra.mxu0 0.0
        %2013 = vmatpush.msra.mxu0 %v1993
        %2014 = vmatmul.f32.gmra.mxu0 %v1996
        %v2015 = vpop.f32.mrf.mxu0
        %v2016 = vadd.f32 0.0, %v2015
        %2017 = vdwg.mxu0
        %2018 = vrot.lane.b32.xlu0 %v390, 124
        %v2019 = vpop.permute.xlu0 %2018
        %v2022 = vsel %vm967, %v1702, 0
        %2024 = vmatpush.msra.mxu0 0.0
        %2025 = vmatpush.msra.mxu0 0.0
        %2026 = vmatpush.msra.mxu0 0.0
        %2027 = vmatpush.msra.mxu0 0.0
        %2028 = vmatpush.msra.mxu0 0.0
        %2029 = vmatpush.msra.mxu0 0.0
        %2030 = vmatpush.msra.mxu0 0.0
        %2031 = vmatpush.msra.mxu0 0.0
        %2032 = vmatpush.msra.mxu0 0.0
        %2033 = vmatpush.msra.mxu0 0.0
        %2034 = vmatpush.msra.mxu0 0.0
        %2035 = vmatpush.msra.mxu0 0.0
        %2036 = vmatpush.msra.mxu0 0.0
        %2037 = vmatpush.msra.mxu0 0.0
        %2038 = vmatpush.msra.mxu0 0.0
        %2039 = vmatpush.msra.mxu0 %v2019
        %2040 = vmatmul.f32.gmra.mxu0 %v2022
        %v2041 = vpop.f32.mrf.mxu0
        %v2042 = vadd.f32 0.0, %v2041
        %2043 = vdwg.mxu0
        %2044 = vrot.lane.b32.xlu0 %v393, 124
        %v2045 = vpop.permute.xlu0 %2044
        %v2048 = vsel %vm967, %v1703, 0
        %2050 = vmatpush.msra.mxu0 0.0
        %2051 = vmatpush.msra.mxu0 0.0
        %2052 = vmatpush.msra.mxu0 0.0
        %2053 = vmatpush.msra.mxu0 0.0
        %2054 = vmatpush.msra.mxu0 0.0
        %2055 = vmatpush.msra.mxu0 0.0
        %2056 = vmatpush.msra.mxu0 0.0
        %2057 = vmatpush.msra.mxu0 0.0
        %2058 = vmatpush.msra.mxu0 0.0
        %2059 = vmatpush.msra.mxu0 0.0
        %2060 = vmatpush.msra.mxu0 0.0
        %2061 = vmatpush.msra.mxu0 0.0
        %2062 = vmatpush.msra.mxu0 0.0
        %2063 = vmatpush.msra.mxu0 0.0
        %2064 = vmatpush.msra.mxu0 0.0
        %2065 = vmatpush.msra.mxu0 %v2045
        %2066 = vmatmul.f32.gmra.mxu0 %v2048
        %v2067 = vpop.f32.mrf.mxu0
        %v2068 = vadd.f32 0.0, %v2067
        %2069 = vdwg.mxu0
        %2070 = vrot.lane.b32.xlu0 %v396, 124
        %v2071 = vpop.permute.xlu0 %2070
        %v2074 = vsel %vm967, %v1704, 0
        %2076 = vmatpush.msra.mxu0 0.0
        %2077 = vmatpush.msra.mxu0 0.0
        %2078 = vmatpush.msra.mxu0 0.0
        %2079 = vmatpush.msra.mxu0 0.0
        %2080 = vmatpush.msra.mxu0 0.0
        %2081 = vmatpush.msra.mxu0 0.0
        %2082 = vmatpush.msra.mxu0 0.0
        %2083 = vmatpush.msra.mxu0 0.0
        %2084 = vmatpush.msra.mxu0 0.0
        %2085 = vmatpush.msra.mxu0 0.0
        %2086 = vmatpush.msra.mxu0 0.0
        %2087 = vmatpush.msra.mxu0 0.0
        %2088 = vmatpush.msra.mxu0 0.0
        %2089 = vmatpush.msra.mxu0 0.0
        %2090 = vmatpush.msra.mxu0 0.0
        %2091 = vmatpush.msra.mxu0 %v2071
        %2092 = vmatmul.f32.gmra.mxu0 %v2074
        %v2093 = vpop.f32.mrf.mxu0
        %v2094 = vadd.f32 0.0, %v2093
        %2095 = vdwg.mxu0
        %2096 = vrot.lane.b32.xlu0 %v399, 124
        %v2097 = vpop.permute.xlu0 %2096
        %v2100 = vsel %vm967, %v1705, 0
        %2102 = vmatpush.msra.mxu0 0.0
        %2103 = vmatpush.msra.mxu0 0.0
        %2104 = vmatpush.msra.mxu0 0.0
        %2105 = vmatpush.msra.mxu0 0.0
        %2106 = vmatpush.msra.mxu0 0.0
        %2107 = vmatpush.msra.mxu0 0.0
        %2108 = vmatpush.msra.mxu0 0.0
        %2109 = vmatpush.msra.mxu0 0.0
        %2110 = vmatpush.msra.mxu0 0.0
        %2111 = vmatpush.msra.mxu0 0.0
        %2112 = vmatpush.msra.mxu0 0.0
        %2113 = vmatpush.msra.mxu0 0.0
        %2114 = vmatpush.msra.mxu0 0.0
        %2115 = vmatpush.msra.mxu0 0.0
        %2116 = vmatpush.msra.mxu0 0.0
        %2117 = vmatpush.msra.mxu0 %v2097
        %2118 = vmatmul.f32.gmra.mxu0 %v2100
        %v2119 = vpop.f32.mrf.mxu0
        %v2120 = vadd.f32 0.0, %v2119
        %2121 = vdwg.mxu0
        %v2122 = vrot.slane %v1990, 4
        %vm2123 = vcmask 1047556
        %v2124 = vsel %vm2123, %v2122, %v1938
        %v2125 = vrot.slane %v1938, 4
        %v2126 = vsel %vm2123, %v1990, %v2125
        %v2128 = vunpack.c.l.s4 1983009808
        %v2129 = vunpack.c.0.s8 %v2128
        %v2130 = vperm.slane %v2124, %v2129
        %v2132 = vunpack.c.l.s4 1983009808
        %v2133 = vunpack.c.0.s8 %v2132
        %v2134 = vperm.slane %v2126, %v2133
        %v2135 = vrot.slane %v2016, 4
        %v2136 = vsel %vm2123, %v2135, %v1964
        %v2137 = vrot.slane %v1964, 4
        %v2138 = vsel %vm2123, %v2016, %v2137
        %v2140 = vunpack.c.l.s4 1983009808
        %v2141 = vunpack.c.0.s8 %v2140
        %v2142 = vperm.slane %v2136, %v2141
        %v2144 = vunpack.c.l.s4 1983009808
        %v2145 = vunpack.c.0.s8 %v2144
        %v2146 = vperm.slane %v2138, %v2145
        %v2147 = vrot.slane %v2094, 4
        %v2148 = vsel %vm2123, %v2147, %v2042
        %v2149 = vrot.slane %v2042, 4
        %v2150 = vsel %vm2123, %v2094, %v2149
        %v2152 = vunpack.c.l.s4 1983009808
        %v2153 = vunpack.c.0.s8 %v2152
        %v2154 = vperm.slane %v2148, %v2153
        %v2156 = vunpack.c.l.s4 1983009808
        %v2157 = vunpack.c.0.s8 %v2156
        %v2158 = vperm.slane %v2150, %v2157
        %v2159 = vrot.slane %v2120, 4
        %v2160 = vsel %vm2123, %v2159, %v2068
        %v2161 = vrot.slane %v2068, 4
        %v2162 = vsel %vm2123, %v2120, %v2161
        %v2164 = vunpack.c.l.s4 1983009808
        %v2165 = vunpack.c.0.s8 %v2164
        %v2166 = vperm.slane %v2160, %v2165
        %v2168 = vunpack.c.l.s4 1983009808
        %v2169 = vunpack.c.0.s8 %v2168
        %v2170 = vperm.slane %v2162, %v2169
        %v2171 = vrot.slane %v2142, 4
        %v2172 = vsel %vm2123, %v2171, %v2130
        %v2173 = vrot.slane %v2130, 4
        %v2174 = vsel %vm2123, %v2142, %v2173
        %v2176 = vunpack.c.l.s4 1934713408
        %v2177 = vunpack.c.0.s8 %v2176
        %v2178 = vperm.slane %v2172, %v2177
        %v2180 = vunpack.c.l.s4 1934713408
        %v2181 = vunpack.c.0.s8 %v2180
        %v2182 = vperm.slane %v2174, %v2181
        %v2183 = vrot.slane %v2146, 4
        %v2184 = vsel %vm2123, %v2183, %v2134
        %v2185 = vrot.slane %v2134, 4
        %v2186 = vsel %vm2123, %v2146, %v2185
        %v2188 = vunpack.c.l.s4 1934713408
        %v2189 = vunpack.c.0.s8 %v2188
        %v2190 = vperm.slane %v2184, %v2189
        %v2192 = vunpack.c.l.s4 1934713408
        %v2193 = vunpack.c.0.s8 %v2192
        %v2194 = vperm.slane %v2186, %v2193
        %v2195 = vrot.slane %v2166, 4
        %v2196 = vsel %vm2123, %v2195, %v2154
        %v2197 = vrot.slane %v2154, 4
        %v2198 = vsel %vm2123, %v2166, %v2197
        %v2200 = vunpack.c.l.s4 1934713408
        %v2201 = vunpack.c.0.s8 %v2200
        %v2202 = vperm.slane %v2196, %v2201
        %v2204 = vunpack.c.l.s4 1934713408
        %v2205 = vunpack.c.0.s8 %v2204
        %v2206 = vperm.slane %v2198, %v2205
        %v2207 = vrot.slane %v2170, 4
        %v2208 = vsel %vm2123, %v2207, %v2158
        %v2209 = vrot.slane %v2158, 4
        %v2210 = vsel %vm2123, %v2170, %v2209
        %v2212 = vunpack.c.l.s4 1934713408
        %v2213 = vunpack.c.0.s8 %v2212
        %v2214 = vperm.slane %v2208, %v2213
        %v2216 = vunpack.c.l.s4 1934713408
        %v2217 = vunpack.c.0.s8 %v2216
        %v2218 = vperm.slane %v2210, %v2217
        %v2219 = vrot.slane %v2202, 4
        %v2220 = vsel %vm2123, %v2219, %v2178
        %v2221 = vrot.slane %v2178, 4
        %v2222 = vsel %vm2123, %v2202, %v2221
        %v2223 = vrot.slane %v2206, 4
        %v2224 = vsel %vm2123, %v2223, %v2182
        %v2225 = vrot.slane %v2182, 4
        %v2226 = vsel %vm2123, %v2206, %v2225
        %v2227 = vrot.slane %v2214, 4
        %v2228 = vsel %vm2123, %v2227, %v2190
        %v2229 = vrot.slane %v2190, 4
        %v2230 = vsel %vm2123, %v2214, %v2229
        %v2231 = vrot.slane %v2218, 4
        %v2232 = vsel %vm2123, %v2231, %v2194
        %v2233 = vrot.slane %v2194, 4
        %v2234 = vsel %vm2123, %v2218, %v2233
        %s2235 = sld [smem:[#allocation2]]
        %v2236 = vadd.f32 %v2220, %v1730
        %v2237 = vadd.f32 %v2222, %v1756
        %v2238 = vadd.f32 %v2224, %v1782
        %v2239 = vadd.f32 %v2226, %v1808
        %v2240 = vadd.f32 %v2228, %v1834
        %v2241 = vadd.f32 %v2230, %v1860
        %v2242 = vadd.f32 %v2232, %v1886
        %v2243 = vadd.f32 %v2234, %v1912
        %v2244 = vstv %s2235
        %v2245 = vmul.f32 %v2244, %v2236
        %v2246 = vmul.f32 %v2244, %v2237
        %v2247 = vmul.f32 %v2244, %v2238
        %v2248 = vmul.f32 %v2244, %v2239
        %v2249 = vmul.f32 %v2244, %v2240
        %v2250 = vmul.f32 %v2244, %v2241
        %v2251 = vmul.f32 %v2244, %v2242
        %v2252 = vmul.f32 %v2244, %v2243
        %v2253 = vadd.f32 %v2245, %v248
        %v2254 = vadd.f32 %v2246, %v249
        %v2255 = vadd.f32 %v2247, %v250
        %v2256 = vadd.f32 %v2248, %v251
        %v2257 = vadd.f32 %v2249, %v252
        %v2258 = vadd.f32 %v2250, %v253
        %v2259 = vadd.f32 %v2251, %v254
        %v2260 = vadd.f32 %v2252, %v255
        %v2261 = vrot.slane %v2255, 4
        %v2262 = vsel %vm2123, %v2261, %v2253
        %v2263 = vrot.slane %v2253, 4
        %v2264 = vsel %vm2123, %v2255, %v2263
        %v2266 = vunpack.c.l.s4 1983009808
        %v2267 = vunpack.c.0.s8 %v2266
        %v2268 = vperm.slane %v2262, %v2267
        %v2270 = vunpack.c.l.s4 1983009808
        %v2271 = vunpack.c.0.s8 %v2270
        %v2272 = vperm.slane %v2264, %v2271
        %v2273 = vrot.slane %v2256, 4
        %v2274 = vsel %vm2123, %v2273, %v2254
        %v2275 = vrot.slane %v2254, 4
        %v2276 = vsel %vm2123, %v2256, %v2275
        %v2278 = vunpack.c.l.s4 1983009808
        %v2279 = vunpack.c.0.s8 %v2278
        %v2280 = vperm.slane %v2274, %v2279
        %v2282 = vunpack.c.l.s4 1983009808
        %v2283 = vunpack.c.0.s8 %v2282
        %v2284 = vperm.slane %v2276, %v2283
        %v2285 = vrot.slane %v2259, 4
        %v2286 = vsel %vm2123, %v2285, %v2257
        %v2287 = vrot.slane %v2257, 4
        %v2288 = vsel %vm2123, %v2259, %v2287
        %v2290 = vunpack.c.l.s4 1983009808
        %v2291 = vunpack.c.0.s8 %v2290
        %v2292 = vperm.slane %v2286, %v2291
        %v2294 = vunpack.c.l.s4 1983009808
        %v2295 = vunpack.c.0.s8 %v2294
        %v2296 = vperm.slane %v2288, %v2295
        %v2297 = vrot.slane %v2260, 4
        %v2298 = vsel %vm2123, %v2297, %v2258
        %v2299 = vrot.slane %v2258, 4
        %v2300 = vsel %vm2123, %v2260, %v2299
        %v2302 = vunpack.c.l.s4 1983009808
        %v2303 = vunpack.c.0.s8 %v2302
        %v2304 = vperm.slane %v2298, %v2303
        %v2306 = vunpack.c.l.s4 1983009808
        %v2307 = vunpack.c.0.s8 %v2306
        %v2308 = vperm.slane %v2300, %v2307
        %v2309 = vrot.slane %v2280, 4
        %v2310 = vsel %vm2123, %v2309, %v2268
        %v2311 = vrot.slane %v2268, 4
        %v2312 = vsel %vm2123, %v2280, %v2311
        %v2314 = vunpack.c.l.s4 1934713408
        %v2315 = vunpack.c.0.s8 %v2314
        %v2316 = vperm.slane %v2310, %v2315
        %v2318 = vunpack.c.l.s4 1934713408
        %v2319 = vunpack.c.0.s8 %v2318
        %v2320 = vperm.slane %v2312, %v2319
        %v2321 = vrot.slane %v2284, 4
        %v2322 = vsel %vm2123, %v2321, %v2272
        %v2323 = vrot.slane %v2272, 4
        %v2324 = vsel %vm2123, %v2284, %v2323
        %v2326 = vunpack.c.l.s4 1934713408
        %v2327 = vunpack.c.0.s8 %v2326
        %v2328 = vperm.slane %v2322, %v2327
        %v2330 = vunpack.c.l.s4 1934713408
        %v2331 = vunpack.c.0.s8 %v2330
        %v2332 = vperm.slane %v2324, %v2331
        %v2333 = vrot.slane %v2304, 4
        %v2334 = vsel %vm2123, %v2333, %v2292
        %v2335 = vrot.slane %v2292, 4
        %v2336 = vsel %vm2123, %v2304, %v2335
        %v2338 = vunpack.c.l.s4 1934713408
        %v2339 = vunpack.c.0.s8 %v2338
        %v2340 = vperm.slane %v2334, %v2339
        %v2342 = vunpack.c.l.s4 1934713408
        %v2343 = vunpack.c.0.s8 %v2342
        %v2344 = vperm.slane %v2336, %v2343
        %v2345 = vrot.slane %v2308, 4
        %v2346 = vsel %vm2123, %v2345, %v2296
        %v2347 = vrot.slane %v2296, 4
        %v2348 = vsel %vm2123, %v2308, %v2347
        %v2350 = vunpack.c.l.s4 1934713408
        %v2351 = vunpack.c.0.s8 %v2350
        %v2352 = vperm.slane %v2346, %v2351
        %v2354 = vunpack.c.l.s4 1934713408
        %v2355 = vunpack.c.0.s8 %v2354
        %v2356 = vperm.slane %v2348, %v2355
        %v2357 = vrot.slane %v2340, 4
        %v2358 = vsel %vm2123, %v2357, %v2316
        %v2359 = vrot.slane %v2316, 4
        %v2360 = vsel %vm2123, %v2340, %v2359
        %v2361 = vrot.slane %v2344, 4
        %v2362 = vsel %vm2123, %v2361, %v2320
        %v2363 = vrot.slane %v2320, 4
        %v2364 = vsel %vm2123, %v2344, %v2363
        %v2365 = vrot.slane %v2352, 4
        %v2366 = vsel %vm2123, %v2365, %v2328
        %v2367 = vrot.slane %v2328, 4
        %v2368 = vsel %vm2123, %v2352, %v2367
        %v2369 = vrot.slane %v2356, 4
        %v2370 = vsel %vm2123, %v2369, %v2332
        %v2371 = vrot.slane %v2332, 4
        %v2372 = vsel %vm2123, %v2356, %v2371
        %2374 = vrot.lane.b32.xlu0 %v2360, 16
        %v2375 = vpop.permute.xlu0 %2374
        %2378 = vrot.lane.b32.xlu0 %v2362, 32
        %v2379 = vpop.permute.xlu0 %2378
        %2382 = vrot.lane.b32.xlu0 %v2364, 48
        %v2383 = vpop.permute.xlu0 %2382
        %2386 = vrot.lane.b32.xlu0 %v2366, 64
        %v2387 = vpop.permute.xlu0 %2386
        %2390 = vrot.lane.b32.xlu0 %v2368, 80
        %v2391 = vpop.permute.xlu0 %2390
        %2394 = vrot.lane.b32.xlu0 %v2370, 96
        %v2395 = vpop.permute.xlu0 %2394
        %2398 = vrot.lane.b32.xlu0 %v2372, 112
        %v2399 = vpop.permute.xlu0 %2398
        %v2401 = vsel %vm270, %v2358, %v2375
        %vm2402 = vcmask 261120
        %v2403 = vsel %vm2402, %v2401, %v2379
        %vm2404 = vcmask 392192
        %v2405 = vsel %vm2404, %v2403, %v2383
        %vm2406 = vcmask 523264
        %v2407 = vsel %vm2406, %v2405, %v2387
        %vm2408 = vcmask 654336
        %v2409 = vsel %vm2408, %v2407, %v2391
        %vm2410 = vcmask 785408
        %v2411 = vsel %vm2410, %v2409, %v2395
        %vm2412 = vcmask 916480
        %v2413 = vsel %vm2412, %v2411, %v2399
        %2414 = vst [vmem:[%s235] sm:$0xff] %v2413
        %s2415 = sand.u32 %s143, 1
        %s2416 = scalar_lea.sflag [#allocation4], %s2415
        %s2417 = sand.u32 %s143, 1
        %s2418 = smul.addr %s2417, 8
        %s2419 = scalar_lea.vmem [#allocation3], %s2418
        // Predicated region
        $region41: #{tpu_custom_call.1} parent=39 // pred_check
          %p2420 = pneg %p153
        $region42: #{tpu_custom_call.1} parent=39 // pred_check_branch
          %2422 = sbr.rel (%p2420) target = $region44
        $region43: #{tpu_custom_call.1} parent=39 // pred_region
          %2424 = vsyncadd %s2416, 0
          %s2425 = smul.addr %s20, 8
          %s2426 = scalar_lea.hbm %s5, %s2425
          %s2428 = sshll.u32 %s2419, 4
          %s2429 = int_to_ptr.vmem [resolvable:$true] %s2428
          %s2430 = sshll.u32 %s2426, 4
          %s2431 = int_to_ptr.hbm [resolvable:$true] %s2430
          %2433 = dma.vmem_to_hbm [thread:$0]  %s2429, 128, %s2431, %s2416
        $region44: #{tpu_custom_call.1} parent=39 // pred_fallthru
          _
      $region40: #{tpu_custom_call.1} parent=5 // pred_fallthru
        _
      %p2434 = scmp.le.s32.totalorder 2, %s15
      // Predicated region
      $region45: #{tpu_custom_call.1} parent=5 // pred_check
        %p2435 = pneg %p2434
      $region46: #{tpu_custom_call.1} parent=5 // pred_check_branch
        %2437 = sbr.rel (%p2435) target = $region48
      $region47: #{tpu_custom_call.1} parent=5 // pred_region
        %s2438 = ssub.s32 %s15, 2
        // Predicated region
        $region49: #{tpu_custom_call.1} parent=47 // pred_check
          %p2439 = pneg %p159
        $region50: #{tpu_custom_call.1} parent=47 // pred_check_branch
          %2441 = sbr.rel (%p2439) target = $region52
        $region51: #{tpu_custom_call.1} parent=47 // pred_region
          %s2442 = sand.u32 %s144, 1
          %s2443 = scalar_lea.sflag [#allocation4], %s2442
          %s2444 = sand.u32 %s144, 1
          %s2445 = smul.addr %s2444, 8
          %s2446 = scalar_lea.vmem [#allocation3], %s2445
          %2448 = dma.done %s2443, 128
        $region52: #{tpu_custom_call.1} parent=47 // pred_fallthru
          _
      $region48: #{tpu_custom_call.1} parent=5 // pred_fallthru
        _
    $region6: #{tpu_custom_call.1} parent=1 // loop_footer
      %s19 = sadd.s32 1, %s15
    $region7: #{tpu_custom_call.1} parent=1 // loop_footer_branch
      %14 = sbr.rel target = $region3
    $region8: #{tpu_custom_call.1} parent=1 // loop_exit
      _
    %2449 = vsyncpa [#allocation4], 1
    %s2450 = scalar_lea.sflag [#allocation4], 1
    %2451 = vsyncpa %s2450, 1

</llo_original>
